<compile_context>
chip_gen: v7x
topology: tpu7x:2x2x1
jax: 0.10.0
libtpu: 0.0.40
codegen_flags: <defaults>
</compile_context>

<pallas_src>
import math

import jax
import jax.numpy as jnp
from jax import lax
from jax.experimental import pallas as pl
from jax.experimental.pallas import tpu as pltpu


def make_mha_kernel(head_num: int, dim: int):
    hid_dim = dim // head_num

    def mha_kernel(q_ref, k_ref, v_ref,
                   wq_ref, bq_ref, wk_ref, bk_ref,
                   wv_ref, bv_ref, wo_ref, bo_ref,
                   o_ref):
        # Blocks: q (1, tq, D); k/v (1, S, D); weights (D, D) bf16 stored
        # [in, out] (scale already folded into wq/bq); biases (1, D) f32.
        xq = q_ref[0].astype(jnp.bfloat16)        # [tq, D]
        xk = k_ref[0].astype(jnp.bfloat16)        # [S,  D]
        xv = v_ref[0].astype(jnp.bfloat16)        # [S,  D]

        # Input projections: y = x @ W_t + b   (weights pre-transposed, no .T)
        q = (jnp.dot(xq, wq_ref[...], preferred_element_type=jnp.float32)
             + bq_ref[...]).astype(jnp.bfloat16)                         # [tq, D]
        k = (jnp.dot(xk, wk_ref[...], preferred_element_type=jnp.float32)
             + bk_ref[...]).astype(jnp.bfloat16)                         # [S,  D]
        v = (jnp.dot(xv, wv_ref[...], preferred_element_type=jnp.float32)
             + bv_ref[...]).astype(jnp.bfloat16)                         # [S,  D]

        acc = None
        for h in range(head_num):                 # small, static head loop
            lo, hi = h * hid_dim, (h + 1) * hid_dim
            qh = q[:, lo:hi]                      # [tq, hd] bf16
            kh = k[:, lo:hi]                      # [S,  hd] bf16
            vh = v[:, lo:hi]                      # [S,  hd] bf16

            # scores: contract the shared head dim directly (no kh.T relayout)
            s = lax.dot_general(qh, kh, (((1,), (1,)), ((), ())),
                                preferred_element_type=jnp.float32)      # [tq, S]

            # numerically-stable softmax, elementwise math in f32
            s = s - jnp.max(s, axis=-1, keepdims=True)
            p = jnp.exp(s)
            inv_l = pl.reciprocal(jnp.sum(p, axis=-1, keepdims=True),
                                  approx=True)                           # [tq, 1]

            # un-normalized P @ V, then one cheap [tq, hd] rescale
            ctx_h = jnp.dot(p.astype(jnp.bfloat16), vh,
                            preferred_element_type=jnp.float32) * inv_l  # [tq, hd]

            # per-head output projection accumulated -> no lane-axis concat
            contrib = jnp.dot(ctx_h.astype(jnp.bfloat16), wo_ref[lo:hi, :],
                              preferred_element_type=jnp.float32)        # [tq, D]
            acc = contrib if acc is None else acc + contrib

        o_ref[0] = (acc + bo_ref[...]).astype(o_ref.dtype)

    return mha_kernel


def multi_head_attention(query, key, value, params, *, head_num, seq_block=None):
    """query/key/value: [B, S, D] float32. params: PyTorch-style weights/biases."""
    B, S, D = query.shape
    assert D % head_num == 0
    hid_dim = D // head_num
    scale = 1.0 / math.sqrt(hid_dim)

    # Query-tile size: full sequence for small S, otherwise a 128/256 tile.
    if seq_block is None:
        seq_block = S
        for cand in (256, 128):
            if S > cand and S % cand == 0:
                seq_block = cand
                break
    assert S % seq_block == 0
    n_seq = S // seq_block

    # Host-side weight prep: pre-transpose to [in, out], fold the 1/sqrt(hd)
    # scale into Wq/bq, cast weights to bf16 (biases stay f32 for f32 adds).
    wq_t = (params["wq"] * scale).T.astype(jnp.bfloat16)
    wk_t = params["wk"].T.astype(jnp.bfloat16)
    wv_t = params["wv"].T.astype(jnp.bfloat16)
    wo_t = params["wo"].T.astype(jnp.bfloat16)
    bq = (params["bq"] * scale).astype(jnp.float32)
    bk = params["bk"].astype(jnp.float32)
    bv = params["bv"].astype(jnp.float32)
    bo = params["bo"].astype(jnp.float32)

    kernel = make_mha_kernel(head_num, D)

    q_spec = pl.BlockSpec((1, seq_block, D), lambda b, i: (b, i, 0))
    kv_spec = pl.BlockSpec((1, S, D), lambda b, i: (b, 0, 0))
    w_spec = pl.BlockSpec((D, D), lambda b, i: (0, 0))
    b_spec = pl.BlockSpec((1, D), lambda b, i: (0, 0))
    out_spec = pl.BlockSpec((1, seq_block, D), lambda b, i: (b, i, 0))

    # Size scoped VMEM to the actual resident set (double-buffered blocks +
    # live intermediates) with generous margin, clamped to 64 MiB (v7x cap).
    f32b, bf16b = 4, 2
    act_bytes = 2 * (2 * seq_block * D + 2 * S * D) * f32b     # q/out + k/v tiles
    wgt_bytes = 2 * (4 * D * D * bf16b + 4 * D * f32b)         # weights + biases
    tmp_bytes = (3 * S * D + 3 * seq_block * D + 2 * seq_block * S) * f32b
    vmem_limit = int(min(max(3 * (act_bytes + wgt_bytes + tmp_bytes),
                             8 * 1024 * 1024), 64 * 1024 * 1024))

    return pl.pallas_call(
        kernel,
        out_shape=jax.ShapeDtypeStruct((B, S, D), query.dtype),
        grid_spec=pltpu.PrefetchScalarGridSpec(
            num_scalar_prefetch=0,
            grid=(B, n_seq),
            in_specs=[
                q_spec, kv_spec, kv_spec,
                w_spec, b_spec,   # Wq, bq  (scale folded)
                w_spec, b_spec,   # Wk, bk
                w_spec, b_spec,   # Wv, bv
                w_spec, b_spec,   # Wo, bo
            ],
            out_specs=out_spec,
        ),
        compiler_params=pltpu.CompilerParams(
            dimension_semantics=("parallel", "parallel"),
            vmem_limit_bytes=vmem_limit),
    )(query, key, value,
      wq_t, bq, wk_t, bk, wv_t, bv, wo_t, bo)


def reference_mha(query, key, value, params, *, head_num):
    """Pure-JAX f32 reference mirroring the PyTorch module."""
    B, S, D = query.shape
    hd = D // head_num

    def lin(x, w, b):
        return x @ w.T + b[0]

    q = lin(query, params["wq"], params["bq"]).reshape(B, S, head_num, hd).transpose(0, 2, 1, 3)
    k = lin(key, params["wk"], params["bk"]).reshape(B, S, head_num, hd).transpose(0, 2, 1, 3)
    v = lin(value, params["wv"], params["bv"]).reshape(B, S, head_num, hd).transpose(0, 2, 1, 3)
    s = jnp.einsum("bhqd,bhkd->bhqk", q, k) / math.sqrt(hd)
    p = jax.nn.softmax(s, axis=-1)
    o = jnp.einsum("bhqk,bhkd->bhqd", p, v).transpose(0, 2, 1, 3).reshape(B, S, D)
    return lin(o, params["wo"], params["bo"])


if __name__ == "__main__":
    # Small shapes consistent with the module's forward:
    B, S, D, H = 2, 8, 32, 4   # batch, seq, dim, head_num

    key0 = jax.random.PRNGKey(0)
    keys = jax.random.split(key0, 11)

    # Deterministic parameter init (nn.Linear-like uniform(-1/sqrt(D), 1/sqrt(D)))
    bound = 1.0 / math.sqrt(D)
    params = {
        "wq": jax.random.uniform(keys[0], (D, D), jnp.float32, -bound, bound),
        "bq": jax.random.uniform(keys[1], (1, D), jnp.float32, -bound, bound),
        "wk": jax.random.uniform(keys[2], (D, D), jnp.float32, -bound, bound),
        "bk": jax.random.uniform(keys[3], (1, D), jnp.float32, -bound, bound),
        "wv": jax.random.uniform(keys[4], (D, D), jnp.float32, -bound, bound),
        "bv": jax.random.uniform(keys[5], (1, D), jnp.float32, -bound, bound),
        "wo": jax.random.uniform(keys[6], (D, D), jnp.float32, -bound, bound),
        "bo": jax.random.uniform(keys[7], (1, D), jnp.float32, -bound, bound),
    }

    query = jax.random.normal(keys[8], (B, S, D), jnp.float32)
    key_in = jax.random.normal(keys[9], (B, S, D), jnp.float32)
    value = jax.random.normal(keys[10], (B, S, D), jnp.float32)

    out = multi_head_attention(query, key_in, value, params, head_num=H)
    out = jax.block_until_ready(out)

    ref = reference_mha(query, key_in, value, params, head_num=H)
    assert out.shape == (B, S, D)
    # bf16 MXU operands + approx reciprocal -> loosened tolerance vs f32 ref.
    assert jnp.allclose(out, ref, atol=5e-2, rtol=5e-2), "mismatch vs JAX reference"

    print("KERNEL_OK")
</pallas_src>

<mosaic_0001>
module attributes {stable_mosaic.version = 11 : i64} {
  func.func @mha_kernel(%arg0: i32, %arg1: i32, %arg2: memref<1x8x32xf32, #tpu.memory_space<vmem>>, %arg3: memref<1x8x32xf32, #tpu.memory_space<vmem>>, %arg4: memref<1x8x32xf32, #tpu.memory_space<vmem>>, %arg5: memref<32x32xbf16, #tpu.memory_space<vmem>>, %arg6: memref<1x32xf32, #tpu.memory_space<vmem>>, %arg7: memref<32x32xbf16, #tpu.memory_space<vmem>>, %arg8: memref<1x32xf32, #tpu.memory_space<vmem>>, %arg9: memref<32x32xbf16, #tpu.memory_space<vmem>>, %arg10: memref<1x32xf32, #tpu.memory_space<vmem>>, %arg11: memref<32x32xbf16, #tpu.memory_space<vmem>>, %arg12: memref<1x32xf32, #tpu.memory_space<vmem>>, %arg13: memref<1x8x32xf32, #tpu.memory_space<vmem>>) attributes {dimension_semantics = [#tpu.dimension_semantics<parallel>, #tpu.dimension_semantics<parallel>], iteration_bounds = array<i64: 2, 1>, scalar_prefetch = 0 : i64, scratch_operands = 0 : i64, tpu.core_type = #tpu.core_type<tc>, window_params = [{transform_indices = @transform_0, window_bounds = array<i64: 1, 8, 32>}, {transform_indices = @transform_1, window_bounds = array<i64: 1, 8, 32>}, {transform_indices = @transform_2, window_bounds = array<i64: 1, 8, 32>}, {pipeline_mode = #tpu.pipeline_mode<synchronous>, transform_indices = @transform_3, window_bounds = array<i64: 32, 32>}, {pipeline_mode = #tpu.pipeline_mode<synchronous>, transform_indices = @transform_4, window_bounds = array<i64: 1, 32>}, {pipeline_mode = #tpu.pipeline_mode<synchronous>, transform_indices = @transform_5, window_bounds = array<i64: 32, 32>}, {pipeline_mode = #tpu.pipeline_mode<synchronous>, transform_indices = @transform_6, window_bounds = array<i64: 1, 32>}, {pipeline_mode = #tpu.pipeline_mode<synchronous>, transform_indices = @transform_7, window_bounds = array<i64: 32, 32>}, {pipeline_mode = #tpu.pipeline_mode<synchronous>, transform_indices = @transform_8, window_bounds = array<i64: 1, 32>}, {pipeline_mode = #tpu.pipeline_mode<synchronous>, transform_indices = @transform_9, window_bounds = array<i64: 32, 32>}, {pipeline_mode = #tpu.pipeline_mode<synchronous>, transform_indices = @transform_10, window_bounds = array<i64: 1, 32>}, {transform_indices = @transform_11, window_bounds = array<i64: 1, 8, 32>}]} {
    %c0 = arith.constant 0 : index
    %c0_0 = arith.constant 0 : index
    %c0_1 = arith.constant 0 : index
    %0 = vector.load %arg2[%c0, %c0_0, %c0_1] : memref<1x8x32xf32, #tpu.memory_space<vmem>>, vector<1x8x32xf32>
    %1 = vector.shape_cast %0 : vector<1x8x32xf32> to vector<8x32xf32>
    %2 = arith.truncf %1 : vector<8x32xf32> to vector<8x32xbf16>
    %c0_2 = arith.constant 0 : index
    %c0_3 = arith.constant 0 : index
    %c0_4 = arith.constant 0 : index
    %3 = vector.load %arg3[%c0_2, %c0_3, %c0_4] : memref<1x8x32xf32, #tpu.memory_space<vmem>>, vector<1x8x32xf32>
    %4 = vector.shape_cast %3 : vector<1x8x32xf32> to vector<8x32xf32>
    %5 = arith.truncf %4 : vector<8x32xf32> to vector<8x32xbf16>
    %c0_5 = arith.constant 0 : index
    %c0_6 = arith.constant 0 : index
    %c0_7 = arith.constant 0 : index
    %6 = vector.load %arg4[%c0_5, %c0_6, %c0_7] : memref<1x8x32xf32, #tpu.memory_space<vmem>>, vector<1x8x32xf32>
    %7 = vector.shape_cast %6 : vector<1x8x32xf32> to vector<8x32xf32>
    %8 = arith.truncf %7 : vector<8x32xf32> to vector<8x32xbf16>
    %c0_8 = arith.constant 0 : index
    %c0_9 = arith.constant 0 : index
    %9 = vector.load %arg5[%c0_8, %c0_9] : memref<32x32xbf16, #tpu.memory_space<vmem>>, vector<32x32xbf16>
    %cst = arith.constant dense<0.000000e+00> : vector<8x32xf32>
    %10 = tpu.matmul %2, %9, %cst {dimension_numbers = #tpu.dot_dimension_numbers<[1], [0], [0], [1], [0, 0, 1, 1], [], []>} : vector<8x32xbf16>, vector<32x32xbf16>, vector<8x32xf32> -> vector<8x32xf32>
    %c0_10 = arith.constant 0 : index
    %c0_11 = arith.constant 0 : index
    %11 = vector.load %arg6[%c0_10, %c0_11] : memref<1x32xf32, #tpu.memory_space<vmem>>, vector<1x32xf32>
    %12 = vector.broadcast %11 : vector<1x32xf32> to vector<8x32xf32>
    %13 = arith.addf %10, %12 : vector<8x32xf32>
    %14 = arith.truncf %13 : vector<8x32xf32> to vector<8x32xbf16>
    %c0_12 = arith.constant 0 : index
    %c0_13 = arith.constant 0 : index
    %15 = vector.load %arg7[%c0_12, %c0_13] : memref<32x32xbf16, #tpu.memory_space<vmem>>, vector<32x32xbf16>
    %cst_14 = arith.constant dense<0.000000e+00> : vector<8x32xf32>
    %16 = tpu.matmul %5, %15, %cst_14 {dimension_numbers = #tpu.dot_dimension_numbers<[1], [0], [0], [1], [0, 0, 1, 1], [], []>} : vector<8x32xbf16>, vector<32x32xbf16>, vector<8x32xf32> -> vector<8x32xf32>
    %c0_15 = arith.constant 0 : index
    %c0_16 = arith.constant 0 : index
    %17 = vector.load %arg8[%c0_15, %c0_16] : memref<1x32xf32, #tpu.memory_space<vmem>>, vector<1x32xf32>
    %18 = vector.broadcast %17 : vector<1x32xf32> to vector<8x32xf32>
    %19 = arith.addf %16, %18 : vector<8x32xf32>
    %20 = arith.truncf %19 : vector<8x32xf32> to vector<8x32xbf16>
    %c0_17 = arith.constant 0 : index
    %c0_18 = arith.constant 0 : index
    %21 = vector.load %arg9[%c0_17, %c0_18] : memref<32x32xbf16, #tpu.memory_space<vmem>>, vector<32x32xbf16>
    %cst_19 = arith.constant dense<0.000000e+00> : vector<8x32xf32>
    %22 = tpu.matmul %8, %21, %cst_19 {dimension_numbers = #tpu.dot_dimension_numbers<[1], [0], [0], [1], [0, 0, 1, 1], [], []>} : vector<8x32xbf16>, vector<32x32xbf16>, vector<8x32xf32> -> vector<8x32xf32>
    %c0_20 = arith.constant 0 : index
    %c0_21 = arith.constant 0 : index
    %23 = vector.load %arg10[%c0_20, %c0_21] : memref<1x32xf32, #tpu.memory_space<vmem>>, vector<1x32xf32>
    %24 = vector.broadcast %23 : vector<1x32xf32> to vector<8x32xf32>
    %25 = arith.addf %22, %24 : vector<8x32xf32>
    %26 = arith.truncf %25 : vector<8x32xf32> to vector<8x32xbf16>
    %27 = vector.extract_strided_slice %14 {offsets = [0, 0], sizes = [8, 8], strides = [1, 1]} : vector<8x32xbf16> to vector<8x8xbf16>
    %28 = vector.extract_strided_slice %20 {offsets = [0, 0], sizes = [8, 8], strides = [1, 1]} : vector<8x32xbf16> to vector<8x8xbf16>
    %29 = vector.extract_strided_slice %26 {offsets = [0, 0], sizes = [8, 8], strides = [1, 1]} : vector<8x32xbf16> to vector<8x8xbf16>
    %cst_22 = arith.constant dense<0.000000e+00> : vector<8x8xf32>
    %30 = tpu.matmul %27, %28, %cst_22 {dimension_numbers = #tpu.dot_dimension_numbers<[1], [1], [0], [0], [0, 0, 1, 0], [], []>} : vector<8x8xbf16>, vector<8x8xbf16>, vector<8x8xf32> -> vector<8x8xf32>
    %cst_23 = arith.constant dense<0xFF800000> : vector<8xf32>
    %31 = vector.multi_reduction <maximumf>, %30, %cst_23 [1] : vector<8x8xf32> to vector<8xf32>
    %32 = vector.shape_cast %31 : vector<8xf32> to vector<8x1xf32>
    %33 = vector.broadcast %32 : vector<8x1xf32> to vector<8x8xf32>
    %34 = arith.subf %30, %33 : vector<8x8xf32>
    %35 = math.exp %34 : vector<8x8xf32>
    %cst_24 = arith.constant dense<0.000000e+00> : vector<8xf32>
    %36 = vector.multi_reduction <add>, %35, %cst_24 [1] : vector<8x8xf32> to vector<8xf32>
    %37 = vector.shape_cast %36 : vector<8xf32> to vector<8x1xf32>
    %38 = tpu.reciprocal %37 {approx = true} : vector<8x1xf32> -> vector<8x1xf32>
    %39 = arith.truncf %35 : vector<8x8xf32> to vector<8x8xbf16>
    %cst_25 = arith.constant dense<0.000000e+00> : vector<8x8xf32>
    %40 = tpu.matmul %39, %29, %cst_25 {dimension_numbers = #tpu.dot_dimension_numbers<[1], [0], [0], [1], [0, 0, 1, 1], [], []>} : vector<8x8xbf16>, vector<8x8xbf16>, vector<8x8xf32> -> vector<8x8xf32>
    %41 = vector.broadcast %38 : vector<8x1xf32> to vector<8x8xf32>
    %42 = arith.mulf %40, %41 : vector<8x8xf32>
    %43 = arith.truncf %42 : vector<8x8xf32> to vector<8x8xbf16>
    %c0_26 = arith.constant 0 : index
    %c0_27 = arith.constant 0 : index
    %44 = vector.load %arg11[%c0_26, %c0_27] : memref<32x32xbf16, #tpu.memory_space<vmem>>, vector<8x32xbf16>
    %cst_28 = arith.constant dense<0.000000e+00> : vector<8x32xf32>
    %45 = tpu.matmul %43, %44, %cst_28 {dimension_numbers = #tpu.dot_dimension_numbers<[1], [0], [0], [1], [0, 0, 1, 1], [], []>} : vector<8x8xbf16>, vector<8x32xbf16>, vector<8x32xf32> -> vector<8x32xf32>
    %46 = vector.extract_strided_slice %14 {offsets = [0, 8], sizes = [8, 8], strides = [1, 1]} : vector<8x32xbf16> to vector<8x8xbf16>
    %47 = vector.extract_strided_slice %20 {offsets = [0, 8], sizes = [8, 8], strides = [1, 1]} : vector<8x32xbf16> to vector<8x8xbf16>
    %48 = vector.extract_strided_slice %26 {offsets = [0, 8], sizes = [8, 8], strides = [1, 1]} : vector<8x32xbf16> to vector<8x8xbf16>
    %cst_29 = arith.constant dense<0.000000e+00> : vector<8x8xf32>
    %49 = tpu.matmul %46, %47, %cst_29 {dimension_numbers = #tpu.dot_dimension_numbers<[1], [1], [0], [0], [0, 0, 1, 0], [], []>} : vector<8x8xbf16>, vector<8x8xbf16>, vector<8x8xf32> -> vector<8x8xf32>
    %cst_30 = arith.constant dense<0xFF800000> : vector<8xf32>
    %50 = vector.multi_reduction <maximumf>, %49, %cst_30 [1] : vector<8x8xf32> to vector<8xf32>
    %51 = vector.shape_cast %50 : vector<8xf32> to vector<8x1xf32>
    %52 = vector.broadcast %51 : vector<8x1xf32> to vector<8x8xf32>
    %53 = arith.subf %49, %52 : vector<8x8xf32>
    %54 = math.exp %53 : vector<8x8xf32>
    %cst_31 = arith.constant dense<0.000000e+00> : vector<8xf32>
    %55 = vector.multi_reduction <add>, %54, %cst_31 [1] : vector<8x8xf32> to vector<8xf32>
    %56 = vector.shape_cast %55 : vector<8xf32> to vector<8x1xf32>
    %57 = tpu.reciprocal %56 {approx = true} : vector<8x1xf32> -> vector<8x1xf32>
    %58 = arith.truncf %54 : vector<8x8xf32> to vector<8x8xbf16>
    %cst_32 = arith.constant dense<0.000000e+00> : vector<8x8xf32>
    %59 = tpu.matmul %58, %48, %cst_32 {dimension_numbers = #tpu.dot_dimension_numbers<[1], [0], [0], [1], [0, 0, 1, 1], [], []>} : vector<8x8xbf16>, vector<8x8xbf16>, vector<8x8xf32> -> vector<8x8xf32>
    %60 = vector.broadcast %57 : vector<8x1xf32> to vector<8x8xf32>
    %61 = arith.mulf %59, %60 : vector<8x8xf32>
    %62 = arith.truncf %61 : vector<8x8xf32> to vector<8x8xbf16>
    %c8 = arith.constant 8 : index
    %c0_33 = arith.constant 0 : index
    %63 = vector.load %arg11[%c8, %c0_33] : memref<32x32xbf16, #tpu.memory_space<vmem>>, vector<8x32xbf16>
    %cst_34 = arith.constant dense<0.000000e+00> : vector<8x32xf32>
    %64 = tpu.matmul %62, %63, %cst_34 {dimension_numbers = #tpu.dot_dimension_numbers<[1], [0], [0], [1], [0, 0, 1, 1], [], []>} : vector<8x8xbf16>, vector<8x32xbf16>, vector<8x32xf32> -> vector<8x32xf32>
    %65 = arith.addf %45, %64 : vector<8x32xf32>
    %66 = vector.extract_strided_slice %14 {offsets = [0, 16], sizes = [8, 8], strides = [1, 1]} : vector<8x32xbf16> to vector<8x8xbf16>
    %67 = vector.extract_strided_slice %20 {offsets = [0, 16], sizes = [8, 8], strides = [1, 1]} : vector<8x32xbf16> to vector<8x8xbf16>
    %68 = vector.extract_strided_slice %26 {offsets = [0, 16], sizes = [8, 8], strides = [1, 1]} : vector<8x32xbf16> to vector<8x8xbf16>
    %cst_35 = arith.constant dense<0.000000e+00> : vector<8x8xf32>
    %69 = tpu.matmul %66, %67, %cst_35 {dimension_numbers = #tpu.dot_dimension_numbers<[1], [1], [0], [0], [0, 0, 1, 0], [], []>} : vector<8x8xbf16>, vector<8x8xbf16>, vector<8x8xf32> -> vector<8x8xf32>
    %cst_36 = arith.constant dense<0xFF800000> : vector<8xf32>
    %70 = vector.multi_reduction <maximumf>, %69, %cst_36 [1] : vector<8x8xf32> to vector<8xf32>
    %71 = vector.shape_cast %70 : vector<8xf32> to vector<8x1xf32>
    %72 = vector.broadcast %71 : vector<8x1xf32> to vector<8x8xf32>
    %73 = arith.subf %69, %72 : vector<8x8xf32>
    %74 = math.exp %73 : vector<8x8xf32>
    %cst_37 = arith.constant dense<0.000000e+00> : vector<8xf32>
    %75 = vector.multi_reduction <add>, %74, %cst_37 [1] : vector<8x8xf32> to vector<8xf32>
    %76 = vector.shape_cast %75 : vector<8xf32> to vector<8x1xf32>
    %77 = tpu.reciprocal %76 {approx = true} : vector<8x1xf32> -> vector<8x1xf32>
    %78 = arith.truncf %74 : vector<8x8xf32> to vector<8x8xbf16>
    %cst_38 = arith.constant dense<0.000000e+00> : vector<8x8xf32>
    %79 = tpu.matmul %78, %68, %cst_38 {dimension_numbers = #tpu.dot_dimension_numbers<[1], [0], [0], [1], [0, 0, 1, 1], [], []>} : vector<8x8xbf16>, vector<8x8xbf16>, vector<8x8xf32> -> vector<8x8xf32>
    %80 = vector.broadcast %77 : vector<8x1xf32> to vector<8x8xf32>
    %81 = arith.mulf %79, %80 : vector<8x8xf32>
    %82 = arith.truncf %81 : vector<8x8xf32> to vector<8x8xbf16>
    %c16 = arith.constant 16 : index
    %c0_39 = arith.constant 0 : index
    %83 = vector.load %arg11[%c16, %c0_39] : memref<32x32xbf16, #tpu.memory_space<vmem>>, vector<8x32xbf16>
    %cst_40 = arith.constant dense<0.000000e+00> : vector<8x32xf32>
    %84 = tpu.matmul %82, %83, %cst_40 {dimension_numbers = #tpu.dot_dimension_numbers<[1], [0], [0], [1], [0, 0, 1, 1], [], []>} : vector<8x8xbf16>, vector<8x32xbf16>, vector<8x32xf32> -> vector<8x32xf32>
    %85 = arith.addf %65, %84 : vector<8x32xf32>
    %86 = vector.extract_strided_slice %14 {offsets = [0, 24], sizes = [8, 8], strides = [1, 1]} : vector<8x32xbf16> to vector<8x8xbf16>
    %87 = vector.extract_strided_slice %20 {offsets = [0, 24], sizes = [8, 8], strides = [1, 1]} : vector<8x32xbf16> to vector<8x8xbf16>
    %88 = vector.extract_strided_slice %26 {offsets = [0, 24], sizes = [8, 8], strides = [1, 1]} : vector<8x32xbf16> to vector<8x8xbf16>
    %cst_41 = arith.constant dense<0.000000e+00> : vector<8x8xf32>
    %89 = tpu.matmul %86, %87, %cst_41 {dimension_numbers = #tpu.dot_dimension_numbers<[1], [1], [0], [0], [0, 0, 1, 0], [], []>} : vector<8x8xbf16>, vector<8x8xbf16>, vector<8x8xf32> -> vector<8x8xf32>
    %cst_42 = arith.constant dense<0xFF800000> : vector<8xf32>
    %90 = vector.multi_reduction <maximumf>, %89, %cst_42 [1] : vector<8x8xf32> to vector<8xf32>
    %91 = vector.shape_cast %90 : vector<8xf32> to vector<8x1xf32>
    %92 = vector.broadcast %91 : vector<8x1xf32> to vector<8x8xf32>
    %93 = arith.subf %89, %92 : vector<8x8xf32>
    %94 = math.exp %93 : vector<8x8xf32>
    %cst_43 = arith.constant dense<0.000000e+00> : vector<8xf32>
    %95 = vector.multi_reduction <add>, %94, %cst_43 [1] : vector<8x8xf32> to vector<8xf32>
    %96 = vector.shape_cast %95 : vector<8xf32> to vector<8x1xf32>
    %97 = tpu.reciprocal %96 {approx = true} : vector<8x1xf32> -> vector<8x1xf32>
    %98 = arith.truncf %94 : vector<8x8xf32> to vector<8x8xbf16>
    %cst_44 = arith.constant dense<0.000000e+00> : vector<8x8xf32>
    %99 = tpu.matmul %98, %88, %cst_44 {dimension_numbers = #tpu.dot_dimension_numbers<[1], [0], [0], [1], [0, 0, 1, 1], [], []>} : vector<8x8xbf16>, vector<8x8xbf16>, vector<8x8xf32> -> vector<8x8xf32>
    %100 = vector.broadcast %97 : vector<8x1xf32> to vector<8x8xf32>
    %101 = arith.mulf %99, %100 : vector<8x8xf32>
    %102 = arith.truncf %101 : vector<8x8xf32> to vector<8x8xbf16>
    %c24 = arith.constant 24 : index
    %c0_45 = arith.constant 0 : index
    %103 = vector.load %arg11[%c24, %c0_45] : memref<32x32xbf16, #tpu.memory_space<vmem>>, vector<8x32xbf16>
    %cst_46 = arith.constant dense<0.000000e+00> : vector<8x32xf32>
    %104 = tpu.matmul %102, %103, %cst_46 {dimension_numbers = #tpu.dot_dimension_numbers<[1], [0], [0], [1], [0, 0, 1, 1], [], []>} : vector<8x8xbf16>, vector<8x32xbf16>, vector<8x32xf32> -> vector<8x32xf32>
    %105 = arith.addf %85, %104 : vector<8x32xf32>
    %c0_47 = arith.constant 0 : index
    %c0_48 = arith.constant 0 : index
    %106 = vector.load %arg12[%c0_47, %c0_48] : memref<1x32xf32, #tpu.memory_space<vmem>>, vector<1x32xf32>
    %107 = vector.broadcast %106 : vector<1x32xf32> to vector<8x32xf32>
    %108 = arith.addf %105, %107 : vector<8x32xf32>
    %c0_49 = arith.constant 0 : index
    %c0_50 = arith.constant 0 : index
    %c0_51 = arith.constant 0 : index
    %109 = vector.load %arg13[%c0_49, %c0_50, %c0_51] : memref<1x8x32xf32, #tpu.memory_space<vmem>>, vector<1x8x32xf32>
    %110 = vector.shape_cast %109 : vector<1x8x32xf32> to vector<8x32xf32>
    %111 = vector.shape_cast %108 : vector<8x32xf32> to vector<1x8x32xf32>
    tpu.vector_store %arg13[%c0_49, %c0_50, %c0_51], %111 {strides = array<i32>} : memref<1x8x32xf32, #tpu.memory_space<vmem>>, vector<1x8x32xf32>,
    return
  }
  func.func @transform_0(%arg0: i32, %arg1: i32) -> (i32, i32, i32) {
    %c0_i32 = arith.constant 0 : i32
    %c0_i32_0 = arith.constant 0 : i32
    return %arg0, %arg1, %c0_i32 : i32, i32, i32
  }
  func.func @transform_1(%arg0: i32, %arg1: i32) -> (i32, i32, i32) {
    %c0_i32 = arith.constant 0 : i32
    %c0_i32_0 = arith.constant 0 : i32
    %c0_i32_1 = arith.constant 0 : i32
    return %arg0, %c0_i32, %c0_i32_0 : i32, i32, i32
  }
  func.func @transform_2(%arg0: i32, %arg1: i32) -> (i32, i32, i32) {
    %c0_i32 = arith.constant 0 : i32
    %c0_i32_0 = arith.constant 0 : i32
    %c0_i32_1 = arith.constant 0 : i32
    return %arg0, %c0_i32, %c0_i32_0 : i32, i32, i32
  }
  func.func @transform_3(%arg0: i32, %arg1: i32) -> (i32, i32) {
    %c0_i32 = arith.constant 0 : i32
    %c0_i32_0 = arith.constant 0 : i32
    %c0_i32_1 = arith.constant 0 : i32
    return %c0_i32, %c0_i32_0 : i32, i32
  }
  func.func @transform_4(%arg0: i32, %arg1: i32) -> (i32, i32) {
    %c0_i32 = arith.constant 0 : i32
    %c0_i32_0 = arith.constant 0 : i32
    %c0_i32_1 = arith.constant 0 : i32
    return %c0_i32, %c0_i32_0 : i32, i32
  }
  func.func @transform_5(%arg0: i32, %arg1: i32) -> (i32, i32) {
    %c0_i32 = arith.constant 0 : i32
    %c0_i32_0 = arith.constant 0 : i32
    %c0_i32_1 = arith.constant 0 : i32
    return %c0_i32, %c0_i32_0 : i32, i32
  }
  func.func @transform_6(%arg0: i32, %arg1: i32) -> (i32, i32) {
    %c0_i32 = arith.constant 0 : i32
    %c0_i32_0 = arith.constant 0 : i32
    %c0_i32_1 = arith.constant 0 : i32
    return %c0_i32, %c0_i32_0 : i32, i32
  }
  func.func @transform_7(%arg0: i32, %arg1: i32) -> (i32, i32) {
    %c0_i32 = arith.constant 0 : i32
    %c0_i32_0 = arith.constant 0 : i32
    %c0_i32_1 = arith.constant 0 : i32
    return %c0_i32, %c0_i32_0 : i32, i32
  }
  func.func @transform_8(%arg0: i32, %arg1: i32) -> (i32, i32) {
    %c0_i32 = arith.constant 0 : i32
    %c0_i32_0 = arith.constant 0 : i32
    %c0_i32_1 = arith.constant 0 : i32
    return %c0_i32, %c0_i32_0 : i32, i32
  }
  func.func @transform_9(%arg0: i32, %arg1: i32) -> (i32, i32) {
    %c0_i32 = arith.constant 0 : i32
    %c0_i32_0 = arith.constant 0 : i32
    %c0_i32_1 = arith.constant 0 : i32
    return %c0_i32, %c0_i32_0 : i32, i32
  }
  func.func @transform_10(%arg0: i32, %arg1: i32) -> (i32, i32) {
    %c0_i32 = arith.constant 0 : i32
    %c0_i32_0 = arith.constant 0 : i32
    %c0_i32_1 = arith.constant 0 : i32
    return %c0_i32, %c0_i32_0 : i32, i32
  }
  func.func @transform_11(%arg0: i32, %arg1: i32) -> (i32, i32, i32) {
    %c0_i32 = arith.constant 0 : i32
    %c0_i32_0 = arith.constant 0 : i32
    return %arg0, %arg1, %c0_i32 : i32, i32, i32
  }
}

</mosaic_0001>

<llo_original>
// kernel: tpu_custom_call.1
$region0: #{tpu_custom_call.1}
  #allocation0 [shape = 'u32[]', space=smem, size = 0x4, offset = 0x4, fixed_abs, tag = 'smem constant byte address 0x4 - core index']
  #allocation1 [shape = 'u32[144,128]{1,0:T(1,128)}', space=vmem, size = 0x12000, scoped, tag = 'internal scratch']
  %s0 = inlined_call_operand.hbm [shape: f32[2,8,32], index: 0, kind: input, shape index: {}]
  %s1 = inlined_call_operand.hbm [shape: f32[2,8,32], index: 1, kind: input, shape index: {}]
  %s2 = inlined_call_operand.hbm [shape: f32[2,8,32], index: 2, kind: input, shape index: {}]
  %s3 = inlined_call_operand.hbm [shape: bf16[32,32], index: 3, kind: input, shape index: {}]
  %s4 = inlined_call_operand.vmem [shape: f32[1,32], index: 4, kind: input, shape index: {}]
  %s5 = inlined_call_operand.vmem [shape: bf16[32,32], index: 5, kind: input, shape index: {}]
  %s6 = inlined_call_operand.vmem [shape: f32[1,32], index: 6, kind: input, shape index: {}]
  %s7 = inlined_call_operand.hbm [shape: bf16[32,32], index: 7, kind: input, shape index: {}]
  %s8 = inlined_call_operand.hbm [shape: f32[1,32], index: 8, kind: input, shape index: {}]
  %s9 = inlined_call_operand.vmem [shape: bf16[32,32], index: 9, kind: input, shape index: {}]
  %s10 = inlined_call_operand.vmem [shape: f32[1,32], index: 10, kind: input, shape index: {}]
  %s11 = inlined_call_operand.hbm [shape: f32[2,8,32], index: 11, kind: output, shape index: {}]
  %s12 = sld [smem:[#allocation0]]
  $region101: #{tpu_custom_call.1} parent=0
    _
  %s14 = ssub.s32 1, %s12
  %s15 = scalar_select 0, %s14, %s12
  $region1: #{tpu_custom_call.1} parent=0
    #allocation2 [shape = 'u8[8192]{0}', space=vmem, size = 0x2000, scoped, tag = 'input window, operand 0']
    #allocation3 [shape = 's32[2]{0}', space=sflag, size = 0x8, scoped, tag = 'scoped memory for tpu_custom_call.1']
    #allocation4 [shape = 's32[2]{0}', space=sflag, size = 0x8, scoped, tag = 'scoped memory for tpu_custom_call.1']
    #allocation5 [shape = 'u8[8192]{0}', space=vmem, size = 0x2000, scoped, tag = 'input window, operand 1']
    #allocation6 [shape = 's32[2]{0}', space=sflag, size = 0x8, scoped, tag = 'scoped memory for tpu_custom_call.1']
    #allocation7 [shape = 'u8[8192]{0}', space=vmem, size = 0x2000, scoped, tag = 'input window, operand 2']
    #allocation8 [shape = 'u8[8192]{0}', space=vmem, size = 0x2000, scoped, tag = 'input window, operand 3, single buffered']
    #allocation9 [shape = 's32[1]{0}', space=sflag, size = 0x4, scoped, tag = 'scoped memory for tpu_custom_call.1']
    #allocation10 [shape = 'u8[8192]{0}', space=vmem, size = 0x2000, scoped, tag = 'input window, operand 7, single buffered']
    #allocation11 [shape = 'u8[512]{0}', space=vmem, size = 0x400, scoped, tag = 'input window, operand 8, single buffered']
    #allocation12 [shape = 's32[1]{0}', space=sflag, size = 0x4, scoped, tag = 'scoped memory for tpu_custom_call.1']
    #allocation13 [shape = 'u8[8192]{0}', space=vmem, size = 0x2000, scoped, tag = 'output window, operand 0']
    %16 = vsyncpa [#allocation3], 0
    %s17 = scalar_lea.sflag [#allocation3], 1
    %18 = vsyncpa %s17, 0
    %19 = vsyncpa [#allocation6], 0
    %s20 = scalar_lea.sflag [#allocation6], 1
    %21 = vsyncpa %s20, 0
    %22 = vsyncpa [#allocation9], 0
    %23 = vsyncpa [#allocation12], 0
    %24 = vsyncpa [#allocation4], 0
    %s25 = scalar_lea.sflag [#allocation4], 1
    %26 = vsyncpa %s25, 0
    loop: start=0, step=1, limit=4
    $region2: #{tpu_custom_call.1} parent=1 // loop_pre_header
      _
    $region3: #{tpu_custom_call.1} parent=1 // loop_header
      %s28 = sphi 0, %s32
      %p29 = scmp.ge.s32.totalorder %s28, 4
      %s35 = sphi 0, %s47
      %s36 = sphi 0, %s43
      %s37 = sphi 0, %s35
      %s38 = sphi 0, %s36
      %s39 = sphi 0, %s37
      %s40 = sphi 0, %s38
      %s52 = sphi 0, %s54
      %s55 = sphi 0, %s52
      %s56 = sphi 0, %s55
      %s72 = sphi 0, %s56
      %s78 = sphi 0, %s80
      %s81 = sphi 0, %s78
      %s82 = sphi 0, %s81
      %s98 = sphi 0, %s82
      %s104 = sphi 0, %s106
      %s107 = sphi 0, %s104
      %s108 = sphi 0, %s107
      %s124 = sphi 0, %s108
      %s128 = sphi 0, %s128
      %s130 = sphi 0, %s128
      %s131 = sphi 0, %s130
      %s145 = sphi 0, %s131
      %s149 = sphi 0, %s149
      %s151 = sphi 0, %s149
      %s152 = sphi 0, %s151
      %s166 = sphi 0, %s152
      %s170 = sphi 0, %s170
      %s172 = sphi 0, %s170
      %s173 = sphi 0, %s172
      %s187 = sphi 0, %s173
      %s191 = sphi 0, %s191
      %s193 = sphi 0, %s191
      %s194 = sphi 0, %s193
      %s208 = sphi 0, %s194
      %s212 = sphi 0, %s212
      %s214 = sphi 0, %s212
      %s215 = sphi 0, %s214
      %s229 = sphi 0, %s215
      %s233 = sphi 0, %s233
      %s235 = sphi 0, %s233
      %s236 = sphi 0, %s235
      %s250 = sphi 0, %s236
      %s254 = sphi 0, %s254
      %s256 = sphi 0, %s254
      %s257 = sphi 0, %s256
      %s271 = sphi 0, %s257
      %s275 = sphi 0, %s275
      %s277 = sphi 0, %s275
      %s278 = sphi 0, %s277
      %s292 = sphi 0, %s278
      %s300 = sphi 0, %s302
      %s303 = sphi 0, %s300
      %s304 = sphi 0, %s303
      %s320 = sphi 0, %s304
    $region4: #{tpu_custom_call.1} parent=1 // loop_header_branch
      %31 = sbr.rel (%p29) target = $region8
    $region5: #{tpu_custom_call.1} parent=1 // loop_body
      %s33 = ssub.s32 %s28, 1
      %s34 = ssub.s32 %s28, 2
      %s41 = sadd.s32 1, %s36
      %p42 = scmp.ge.s32.totalorder %s41, 1
      %s43 = scalar_select %p42, 0, %s41
      %s44 = sadd.s32 1, %s35
      %s45 = scalar_select %p42, %s44, %s35
      %p46 = scmp.ge.s32.totalorder %s45, 2
      %s47 = scalar_select %p46, 0, %s45
      %s48 = ssub.s32 %s35, %s47
      %s49 = ssub.s32 %s36, %s43
      %s50 = sor.u32 %s48, %s49
      %p51 = scmp.eq.s32.totalorder %s50, 0
      %s53 = sadd.s32 %s52, 1
      %s54 = scalar_select %p51, %s52, %s53
      %p57 = pneg %p51
      %p58 = scmp.eq.s32.totalorder %s28, 1
      %p59 = por %p57, %p58
      %p60 = scmp.ne.s32.totalorder %s52, %s55
      %p61 = scmp.eq.s32.totalorder %s28, 0
      %p62 = por %p60, %p61
      %p63 = scmp.ne.s32.totalorder %s52, %s55
      %p64 = scmp.eq.s32.totalorder %s33, 1
      %p65 = por %p63, %p64
      %p66 = scmp.ne.s32.totalorder %s55, %s56
      %p67 = scmp.eq.s32.totalorder %s33, 0
      %p68 = por %p66, %p67
      %p69 = scmp.ne.s32.totalorder %s55, %s56
      %p70 = scmp.eq.s32.totalorder %s34, 1
      %p71 = por %p69, %p70
      %p73 = scmp.ne.s32.totalorder %s56, %s72
      %p74 = scmp.eq.s32.totalorder %s34, 0
      %p75 = por %p73, %p74
      %s76 = ssub.s32 %s35, %s47
      %p77 = scmp.eq.s32.totalorder %s76, 0
      %s79 = sadd.s32 %s78, 1
      %s80 = scalar_select %p77, %s78, %s79
      %p83 = pneg %p77
      %p84 = scmp.eq.s32.totalorder %s28, 1
      %p85 = por %p83, %p84
      %p86 = scmp.ne.s32.totalorder %s78, %s81
      %p87 = scmp.eq.s32.totalorder %s28, 0
      %p88 = por %p86, %p87
      %p89 = scmp.ne.s32.totalorder %s78, %s81
      %p90 = scmp.eq.s32.totalorder %s33, 1
      %p91 = por %p89, %p90
      %p92 = scmp.ne.s32.totalorder %s81, %s82
      %p93 = scmp.eq.s32.totalorder %s33, 0
      %p94 = por %p92, %p93
      %p95 = scmp.ne.s32.totalorder %s81, %s82
      %p96 = scmp.eq.s32.totalorder %s34, 1
      %p97 = por %p95, %p96
      %p99 = scmp.ne.s32.totalorder %s82, %s98
      %p100 = scmp.eq.s32.totalorder %s34, 0
      %p101 = por %p99, %p100
      %s102 = ssub.s32 %s35, %s47
      %p103 = scmp.eq.s32.totalorder %s102, 0
      %s105 = sadd.s32 %s104, 1
      %s106 = scalar_select %p103, %s104, %s105
      %p109 = pneg %p103
      %p110 = scmp.eq.s32.totalorder %s28, 1
      %p111 = por %p109, %p110
      %p112 = scmp.ne.s32.totalorder %s104, %s107
      %p113 = scmp.eq.s32.totalorder %s28, 0
      %p114 = por %p112, %p113
      %p115 = scmp.ne.s32.totalorder %s104, %s107
      %p116 = scmp.eq.s32.totalorder %s33, 1
      %p117 = por %p115, %p116
      %p118 = scmp.ne.s32.totalorder %s107, %s108
      %p119 = scmp.eq.s32.totalorder %s33, 0
      %p120 = por %p118, %p119
      %p121 = scmp.ne.s32.totalorder %s107, %s108
      %p122 = scmp.eq.s32.totalorder %s34, 1
      %p123 = por %p121, %p122
      %p125 = scmp.ne.s32.totalorder %s108, %s124
      %p126 = scmp.eq.s32.totalorder %s34, 0
      %p127 = por %p125, %p126
      %s129 = sadd.s32 %s128, 1
      %p132 = scmp.eq.s32.totalorder %s28, 1
      %p133 = scmp.ne.s32.totalorder %s128, %s130
      %p134 = scmp.eq.s32.totalorder %s28, 0
      %p135 = por %p133, %p134
      %p136 = scmp.ne.s32.totalorder %s128, %s130
      %p137 = scmp.eq.s32.totalorder %s33, 1
      %p138 = por %p136, %p137
      %p139 = scmp.ne.s32.totalorder %s130, %s131
      %p140 = scmp.eq.s32.totalorder %s33, 0
      %p141 = por %p139, %p140
      %p142 = scmp.ne.s32.totalorder %s130, %s131
      %p143 = scmp.eq.s32.totalorder %s34, 1
      %p144 = por %p142, %p143
      %p146 = scmp.ne.s32.totalorder %s131, %s145
      %p147 = scmp.eq.s32.totalorder %s34, 0
      %p148 = por %p146, %p147
      %s150 = sadd.s32 %s149, 1
      %p153 = scmp.eq.s32.totalorder %s28, 1
      %p154 = scmp.ne.s32.totalorder %s149, %s151
      %p155 = scmp.eq.s32.totalorder %s28, 0
      %p156 = por %p154, %p155
      %p157 = scmp.ne.s32.totalorder %s149, %s151
      %p158 = scmp.eq.s32.totalorder %s33, 1
      %p159 = por %p157, %p158
      %p160 = scmp.ne.s32.totalorder %s151, %s152
      %p161 = scmp.eq.s32.totalorder %s33, 0
      %p162 = por %p160, %p161
      %p163 = scmp.ne.s32.totalorder %s151, %s152
      %p164 = scmp.eq.s32.totalorder %s34, 1
      %p165 = por %p163, %p164
      %p167 = scmp.ne.s32.totalorder %s152, %s166
      %p168 = scmp.eq.s32.totalorder %s34, 0
      %p169 = por %p167, %p168
      %s171 = sadd.s32 %s170, 1
      %p174 = scmp.eq.s32.totalorder %s28, 1
      %p175 = scmp.ne.s32.totalorder %s170, %s172
      %p176 = scmp.eq.s32.totalorder %s28, 0
      %p177 = por %p175, %p176
      %p178 = scmp.ne.s32.totalorder %s170, %s172
      %p179 = scmp.eq.s32.totalorder %s33, 1
      %p180 = por %p178, %p179
      %p181 = scmp.ne.s32.totalorder %s172, %s173
      %p182 = scmp.eq.s32.totalorder %s33, 0
      %p183 = por %p181, %p182
      %p184 = scmp.ne.s32.totalorder %s172, %s173
      %p185 = scmp.eq.s32.totalorder %s34, 1
      %p186 = por %p184, %p185
      %p188 = scmp.ne.s32.totalorder %s173, %s187
      %p189 = scmp.eq.s32.totalorder %s34, 0
      %p190 = por %p188, %p189
      %s192 = sadd.s32 %s191, 1
      %p195 = scmp.eq.s32.totalorder %s28, 1
      %p196 = scmp.ne.s32.totalorder %s191, %s193
      %p197 = scmp.eq.s32.totalorder %s28, 0
      %p198 = por %p196, %p197
      %p199 = scmp.ne.s32.totalorder %s191, %s193
      %p200 = scmp.eq.s32.totalorder %s33, 1
      %p201 = por %p199, %p200
      %p202 = scmp.ne.s32.totalorder %s193, %s194
      %p203 = scmp.eq.s32.totalorder %s33, 0
      %p204 = por %p202, %p203
      %p205 = scmp.ne.s32.totalorder %s193, %s194
      %p206 = scmp.eq.s32.totalorder %s34, 1
      %p207 = por %p205, %p206
      %p209 = scmp.ne.s32.totalorder %s194, %s208
      %p210 = scmp.eq.s32.totalorder %s34, 0
      %p211 = por %p209, %p210
      %s213 = sadd.s32 %s212, 1
      %p216 = scmp.eq.s32.totalorder %s28, 1
      %p217 = scmp.ne.s32.totalorder %s212, %s214
      %p218 = scmp.eq.s32.totalorder %s28, 0
      %p219 = por %p217, %p218
      %p220 = scmp.ne.s32.totalorder %s212, %s214
      %p221 = scmp.eq.s32.totalorder %s33, 1
      %p222 = por %p220, %p221
      %p223 = scmp.ne.s32.totalorder %s214, %s215
      %p224 = scmp.eq.s32.totalorder %s33, 0
      %p225 = por %p223, %p224
      %p226 = scmp.ne.s32.totalorder %s214, %s215
      %p227 = scmp.eq.s32.totalorder %s34, 1
      %p228 = por %p226, %p227
      %p230 = scmp.ne.s32.totalorder %s215, %s229
      %p231 = scmp.eq.s32.totalorder %s34, 0
      %p232 = por %p230, %p231
      %s234 = sadd.s32 %s233, 1
      %p237 = scmp.eq.s32.totalorder %s28, 1
      %p238 = scmp.ne.s32.totalorder %s233, %s235
      %p239 = scmp.eq.s32.totalorder %s28, 0
      %p240 = por %p238, %p239
      %p241 = scmp.ne.s32.totalorder %s233, %s235
      %p242 = scmp.eq.s32.totalorder %s33, 1
      %p243 = por %p241, %p242
      %p244 = scmp.ne.s32.totalorder %s235, %s236
      %p245 = scmp.eq.s32.totalorder %s33, 0
      %p246 = por %p244, %p245
      %p247 = scmp.ne.s32.totalorder %s235, %s236
      %p248 = scmp.eq.s32.totalorder %s34, 1
      %p249 = por %p247, %p248
      %p251 = scmp.ne.s32.totalorder %s236, %s250
      %p252 = scmp.eq.s32.totalorder %s34, 0
      %p253 = por %p251, %p252
      %s255 = sadd.s32 %s254, 1
      %p258 = scmp.eq.s32.totalorder %s28, 1
      %p259 = scmp.ne.s32.totalorder %s254, %s256
      %p260 = scmp.eq.s32.totalorder %s28, 0
      %p261 = por %p259, %p260
      %p262 = scmp.ne.s32.totalorder %s254, %s256
      %p263 = scmp.eq.s32.totalorder %s33, 1
      %p264 = por %p262, %p263
      %p265 = scmp.ne.s32.totalorder %s256, %s257
      %p266 = scmp.eq.s32.totalorder %s33, 0
      %p267 = por %p265, %p266
      %p268 = scmp.ne.s32.totalorder %s256, %s257
      %p269 = scmp.eq.s32.totalorder %s34, 1
      %p270 = por %p268, %p269
      %p272 = scmp.ne.s32.totalorder %s257, %s271
      %p273 = scmp.eq.s32.totalorder %s34, 0
      %p274 = por %p272, %p273
      %s276 = sadd.s32 %s275, 1
      %p279 = scmp.eq.s32.totalorder %s28, 1
      %p280 = scmp.ne.s32.totalorder %s275, %s277
      %p281 = scmp.eq.s32.totalorder %s28, 0
      %p282 = por %p280, %p281
      %p283 = scmp.ne.s32.totalorder %s275, %s277
      %p284 = scmp.eq.s32.totalorder %s33, 1
      %p285 = por %p283, %p284
      %p286 = scmp.ne.s32.totalorder %s277, %s278
      %p287 = scmp.eq.s32.totalorder %s33, 0
      %p288 = por %p286, %p287
      %p289 = scmp.ne.s32.totalorder %s277, %s278
      %p290 = scmp.eq.s32.totalorder %s34, 1
      %p291 = por %p289, %p290
      %p293 = scmp.ne.s32.totalorder %s278, %s292
      %p294 = scmp.eq.s32.totalorder %s34, 0
      %p295 = por %p293, %p294
      %s296 = ssub.s32 %s35, %s47
      %s297 = ssub.s32 %s36, %s43
      %s298 = sor.u32 %s296, %s297
      %p299 = scmp.eq.s32.totalorder %s298, 0
      %s301 = sadd.s32 %s300, 1
      %s302 = scalar_select %p299, %s300, %s301
      %p305 = pneg %p299
      %p306 = scmp.eq.s32.totalorder %s28, 1
      %p307 = por %p305, %p306
      %p308 = scmp.ne.s32.totalorder %s300, %s303
      %p309 = scmp.eq.s32.totalorder %s28, 0
      %p310 = por %p308, %p309
      %p311 = scmp.ne.s32.totalorder %s300, %s303
      %p312 = scmp.eq.s32.totalorder %s33, 1
      %p313 = por %p311, %p312
      %p314 = scmp.ne.s32.totalorder %s303, %s304
      %p315 = scmp.eq.s32.totalorder %s33, 0
      %p316 = por %p314, %p315
      %p317 = scmp.ne.s32.totalorder %s303, %s304
      %p318 = scmp.eq.s32.totalorder %s34, 1
      %p319 = por %p317, %p318
      %p321 = scmp.ne.s32.totalorder %s304, %s320
      %p322 = scmp.eq.s32.totalorder %s34, 0
      %p323 = por %p321, %p322
      %p324 = scmp.le.s32.totalorder 1, %s28
      %p325 = scmp.lt.s32.totalorder %s28, 3
      %p326 = pnand %p324, %p325
      %p327 = pneg %p326
      // Predicated region
      $region9: #{tpu_custom_call.1} parent=5 // pred_check
        _
      $region10: #{tpu_custom_call.1} parent=5 // pred_check_branch
        %329 = sbr.rel (%p326) target = $region12
      $region11: #{tpu_custom_call.1} parent=5 // pred_region
        %s330 = ssub.s32 %s28, 1
        // Predicated region
        $region13: #{tpu_custom_call.1} parent=11 // pred_check
          %p331 = pneg %p141
        $region14: #{tpu_custom_call.1} parent=11 // pred_check_branch
          %333 = sbr.rel (%p331) target = $region16
        $region15: #{tpu_custom_call.1} parent=11 // pred_region
          %s335 = ssub.s32 256, 256
          %336 = vsyncadd [#allocation9], %s335
          %s337 = sshll.u32 [#allocation8], 4
          %s338 = int_to_ptr.vmem [resolvable:$true] %s337
          %343 = dma.hbm_to_vmem [thread:$0]  %s3, 256, %s338, [#allocation9], 64, 64, 4
        $region16: #{tpu_custom_call.1} parent=11 // pred_fallthru
          _
        // Predicated region
        $region17: #{tpu_custom_call.1} parent=11 // pred_check
          %p344 = pneg %p162
        $region18: #{tpu_custom_call.1} parent=11 // pred_check_branch
          %346 = sbr.rel (%p344) target = $region20
        $region19: #{tpu_custom_call.1} parent=11 // pred_region
          _
        $region20: #{tpu_custom_call.1} parent=11 // pred_fallthru
          _
        // Predicated region
        $region21: #{tpu_custom_call.1} parent=11 // pred_check
          %p347 = pneg %p183
        $region22: #{tpu_custom_call.1} parent=11 // pred_check_branch
          %349 = sbr.rel (%p347) target = $region24
        $region23: #{tpu_custom_call.1} parent=11 // pred_region
          _
        $region24: #{tpu_custom_call.1} parent=11 // pred_fallthru
          _
        // Predicated region
        $region25: #{tpu_custom_call.1} parent=11 // pred_check
          %p350 = pneg %p204
        $region26: #{tpu_custom_call.1} parent=11 // pred_check_branch
          %352 = sbr.rel (%p350) target = $region28
        $region27: #{tpu_custom_call.1} parent=11 // pred_region
          _
        $region28: #{tpu_custom_call.1} parent=11 // pred_fallthru
          _
        // Predicated region
        $region29: #{tpu_custom_call.1} parent=11 // pred_check
          %p353 = pneg %p225
        $region30: #{tpu_custom_call.1} parent=11 // pred_check_branch
          %355 = sbr.rel (%p353) target = $region32
        $region31: #{tpu_custom_call.1} parent=11 // pred_region
          %s357 = ssub.s32 256, 256
          %358 = vsyncadd [#allocation9], %s357
          %s359 = sshll.u32 [#allocation10], 4
          %s360 = int_to_ptr.vmem [resolvable:$true] %s359
          %365 = dma.hbm_to_vmem [thread:$0]  %s7, 256, %s360, [#allocation9], 64, 64, 4
        $region32: #{tpu_custom_call.1} parent=11 // pred_fallthru
          _
        // Predicated region
        $region33: #{tpu_custom_call.1} parent=11 // pred_check
          %p366 = pneg %p246
        $region34: #{tpu_custom_call.1} parent=11 // pred_check_branch
          %368 = sbr.rel (%p366) target = $region36
        $region35: #{tpu_custom_call.1} parent=11 // pred_region
          %s370 = ssub.s32 16, 16
          %371 = vsyncadd [#allocation12], %s370
          %s373 = sshll.u32 [#allocation11], 4
          %s374 = int_to_ptr.vmem [resolvable:$true] %s373
          %376 = dma.hbm_to_vmem [thread:$0]  %s8, 16, %s374, [#allocation12]
        $region36: #{tpu_custom_call.1} parent=11 // pred_fallthru
          _
        // Predicated region
        $region37: #{tpu_custom_call.1} parent=11 // pred_check
          %p377 = pneg %p267
        $region38: #{tpu_custom_call.1} parent=11 // pred_check_branch
          %379 = sbr.rel (%p377) target = $region40
        $region39: #{tpu_custom_call.1} parent=11 // pred_region
          _
        $region40: #{tpu_custom_call.1} parent=11 // pred_fallthru
          _
        // Predicated region
        $region41: #{tpu_custom_call.1} parent=11 // pred_check
          %p380 = pneg %p288
        $region42: #{tpu_custom_call.1} parent=11 // pred_check_branch
          %382 = sbr.rel (%p380) target = $region44
        $region43: #{tpu_custom_call.1} parent=11 // pred_region
          _
        $region44: #{tpu_custom_call.1} parent=11 // pred_fallthru
          _
      $region12: #{tpu_custom_call.1} parent=5 // pred_fallthru
        _
      %p383 = scmp.lt.s32.totalorder %s28, 2
      // Predicated region
      $region45: #{tpu_custom_call.1} parent=5 // pred_check
        %p384 = pneg %p383
      $region46: #{tpu_custom_call.1} parent=5 // pred_check_branch
        %386 = sbr.rel (%p384) target = $region48
      $region47: #{tpu_custom_call.1} parent=5 // pred_region
        // Predicated region
        $region49: #{tpu_custom_call.1} parent=47 // pred_check
          %p387 = pneg %p62
        $region50: #{tpu_custom_call.1} parent=47 // pred_check_branch
          %389 = sbr.rel (%p387) target = $region52
        $region51: #{tpu_custom_call.1} parent=47 // pred_region
          %s390 = sand.u32 %s52, 1
          %s391 = scalar_lea.sflag [#allocation3], %s390
          %s392 = sand.u32 %s52, 1
          %s393 = smul.addr %s392, 8
          %s394 = scalar_lea.vmem [#allocation2], %s393
          %s396 = ssub.s32 128, 128
          %397 = vsyncadd %s391, %s396
          %s398 = sadd.s32 %s36, %s35
          %s399 = smul.addr %s398, 128
          %s400 = scalar_lea.hbm %s0, %s399
          %s402 = sshll.u32 %s394, 4
          %s403 = int_to_ptr.vmem [resolvable:$true] %s402
          %405 = dma.hbm_to_vmem [thread:$0]  %s400, 128, %s403, %s391
        $region52: #{tpu_custom_call.1} parent=47 // pred_fallthru
          _
        // Predicated region
        $region53: #{tpu_custom_call.1} parent=47 // pred_check
          %p406 = pneg %p88
        $region54: #{tpu_custom_call.1} parent=47 // pred_check_branch
          %408 = sbr.rel (%p406) target = $region56
        $region55: #{tpu_custom_call.1} parent=47 // pred_region
          %s409 = sand.u32 %s28, 1
          %s410 = scalar_lea.sflag [#allocation6], %s409
          %s411 = sand.u32 %s78, 1
          %s412 = smul.addr %s411, 8
          %s413 = scalar_lea.vmem [#allocation5], %s412
          %s415 = ssub.s32 128, 128
          %416 = vsyncadd %s410, %s415
          %s417 = smul.addr %s35, 128
          %s418 = scalar_lea.hbm %s1, %s417
          %s420 = sshll.u32 %s413, 4
          %s421 = int_to_ptr.vmem [resolvable:$true] %s420
          %423 = dma.hbm_to_vmem [thread:$0]  %s418, 128, %s421, %s410
        $region56: #{tpu_custom_call.1} parent=47 // pred_fallthru
          _
        // Predicated region
        $region57: #{tpu_custom_call.1} parent=47 // pred_check
          %p424 = pneg %p114
        $region58: #{tpu_custom_call.1} parent=47 // pred_check_branch
          %426 = sbr.rel (%p424) target = $region60
        $region59: #{tpu_custom_call.1} parent=47 // pred_region
          %s427 = sand.u32 %s28, 1
          %s428 = scalar_lea.sflag [#allocation6], %s427
          %s429 = sand.u32 %s104, 1
          %s430 = smul.addr %s429, 8
          %s431 = scalar_lea.vmem [#allocation7], %s430
          %s433 = ssub.s32 128, 128
          %434 = vsyncadd %s428, %s433
          %s435 = smul.addr %s35, 128
          %s436 = scalar_lea.hbm %s2, %s435
          %s438 = sshll.u32 %s431, 4
          %s439 = int_to_ptr.vmem [resolvable:$true] %s438
          %441 = dma.hbm_to_vmem [thread:$0]  %s436, 128, %s439, %s428
        $region60: #{tpu_custom_call.1} parent=47 // pred_fallthru
          _
      $region48: #{tpu_custom_call.1} parent=5 // pred_fallthru
        _
      %p442 = scmp.le.s32.totalorder 1, %s28
      %p443 = scmp.lt.s32.totalorder %s28, 3
      %p444 = pnand %p442, %p443
      %p445 = pneg %p444
      // Predicated region
      $region61: #{tpu_custom_call.1} parent=5 // pred_check
        _
      $region62: #{tpu_custom_call.1} parent=5 // pred_check_branch
        %447 = sbr.rel (%p444) target = $region64
      $region63: #{tpu_custom_call.1} parent=5 // pred_region
        %s448 = ssub.s32 %s28, 1
        %s449 = sand.u32 %s55, 1
        %s450 = scalar_lea.sflag [#allocation3], %s449
        %s451 = sand.u32 %s55, 1
        %s452 = smul.addr %s451, 8
        %s453 = scalar_lea.vmem [#allocation2], %s452
        // Predicated region
        $region65: #{tpu_custom_call.1} parent=63 // pred_check
          %p454 = pneg %p68
        $region66: #{tpu_custom_call.1} parent=63 // pred_check_branch
          %456 = sbr.rel (%p454) target = $region68
        $region67: #{tpu_custom_call.1} parent=63 // pred_region
          %457 = dma.done %s450, 128
        $region68: #{tpu_custom_call.1} parent=63 // pred_fallthru
          _
        %s458 = sand.u32 %s33, 1
        %s459 = scalar_lea.sflag [#allocation6], %s458
        %s460 = sand.u32 %s81, 1
        %s461 = smul.addr %s460, 8
        %s462 = scalar_lea.vmem [#allocation5], %s461
        // Predicated region
        $region69: #{tpu_custom_call.1} parent=63 // pred_check
          %p463 = pneg %p94
        $region70: #{tpu_custom_call.1} parent=63 // pred_check_branch
          %465 = sbr.rel (%p463) target = $region72
        $region71: #{tpu_custom_call.1} parent=63 // pred_region
          %466 = dma.done %s459, 128
        $region72: #{tpu_custom_call.1} parent=63 // pred_fallthru
          _
        %s467 = sand.u32 %s33, 1
        %s468 = scalar_lea.sflag [#allocation6], %s467
        %s469 = sand.u32 %s107, 1
        %s470 = smul.addr %s469, 8
        %s471 = scalar_lea.vmem [#allocation7], %s470
        // Predicated region
        $region73: #{tpu_custom_call.1} parent=63 // pred_check
          %p472 = pneg %p120
        $region74: #{tpu_custom_call.1} parent=63 // pred_check_branch
          %474 = sbr.rel (%p472) target = $region76
        $region75: #{tpu_custom_call.1} parent=63 // pred_region
          %475 = dma.done %s468, 128
        $region76: #{tpu_custom_call.1} parent=63 // pred_fallthru
          _
        // Predicated region
        $region77: #{tpu_custom_call.1} parent=63 // pred_check
          %p476 = pneg %p141
        $region78: #{tpu_custom_call.1} parent=63 // pred_check_branch
          %478 = sbr.rel (%p476) target = $region80
        $region79: #{tpu_custom_call.1} parent=63 // pred_region
          %479 = dma.done [#allocation9], 256
        $region80: #{tpu_custom_call.1} parent=63 // pred_fallthru
          _
        // Predicated region
        $region81: #{tpu_custom_call.1} parent=63 // pred_check
          %p480 = pneg %p225
        $region82: #{tpu_custom_call.1} parent=63 // pred_check_branch
          %482 = sbr.rel (%p480) target = $region84
        $region83: #{tpu_custom_call.1} parent=63 // pred_region
          %483 = dma.done [#allocation9], 256
        $region84: #{tpu_custom_call.1} parent=63 // pred_fallthru
          _
        // Predicated region
        $region85: #{tpu_custom_call.1} parent=63 // pred_check
          %p484 = pneg %p246
        $region86: #{tpu_custom_call.1} parent=63 // pred_check_branch
          %486 = sbr.rel (%p484) target = $region88
        $region87: #{tpu_custom_call.1} parent=63 // pred_region
          %487 = dma.done [#allocation12], 16
        $region88: #{tpu_custom_call.1} parent=63 // pred_fallthru
          _
        %s488 = sand.u32 %s55, 1
        %s489 = scalar_lea.sflag [#allocation3], %s488
        %s490 = sand.u32 %s55, 1
        %s491 = smul.addr %s490, 8
        %s492 = scalar_lea.vmem [#allocation2], %s491
        %p493 = pneg %p68
        %p494 = pneg %p65
        %s495 = sand.u32 %s33, 1
        %s496 = scalar_lea.sflag [#allocation6], %s495
        %s497 = sand.u32 %s81, 1
        %s498 = smul.addr %s497, 8
        %s499 = scalar_lea.vmem [#allocation5], %s498
        %p500 = pneg %p94
        %p501 = pneg %p91
        %s502 = sand.u32 %s33, 1
        %s503 = scalar_lea.sflag [#allocation6], %s502
        %s504 = sand.u32 %s107, 1
        %s505 = smul.addr %s504, 8
        %s506 = scalar_lea.vmem [#allocation7], %s505
        %p507 = pneg %p120
        %p508 = pneg %p117
        %p509 = pneg %p141
        %p510 = pneg %p138
        %p511 = pneg %p162
        %p512 = pneg %p159
        %p513 = pneg %p183
        %p514 = pneg %p180
        %p515 = pneg %p204
        %p516 = pneg %p201
        %p517 = pneg %p225
        %p518 = pneg %p222
        %p519 = pneg %p246
        %p520 = pneg %p243
        %p521 = pneg %p267
        %p522 = pneg %p264
        %p523 = pneg %p288
        %p524 = pneg %p285
        %p525 = pneg %p316
        %p526 = pneg %p313
        %s527 = sand.u32 %s303, 1
        %s528 = scalar_lea.sflag [#allocation4], %s527
        %s529 = sand.u32 %s303, 1
        %s530 = smul.addr %s529, 8
        %s531 = scalar_lea.vmem [#allocation13], %s530
        %v533 = vld [vmem:[%s453] sm:$0xff]
        %v534 = vpack.c.bf16 %v533, %v533
        %v535 = vld [vmem:[%s462] sm:$0xff]
        %v536 = vpack.c.bf16 %v535, %v535
        %v537 = vld [vmem:[%s471] sm:$0xff]
        %v538 = vpack.c.bf16 %v537, %v537
        %v539 = vld [vmem:[#allocation8] sm:$0xf]
        %v540 = vld [vmem:[#allocation8 + $0x4] sm:$0xf]
        %v541 = vld [vmem:[#allocation8 + $0x8] sm:$0xf]
        %v542 = vld [vmem:[#allocation8 + $0xc] sm:$0xf]
        %v543 = vld [vmem:[%s4] sm:$0x1]
        %v545 = vlaneseq
        %v546 = vshrl.u32 %v545, 7
        %v547 = vsub.s32 0, %v546
        %v548 = vrot.slane %v543, %v547
        %v554 = vunpack.c.l.b16 %v539
        %v555 = vunpack.c.l.b16 %v540
        %v556 = vunpack.c.l.b16 %v541
        %v557 = vunpack.c.l.b16 %v542
        %v558 = vpack.c.b16 %v555, %v554
        %v559 = vpack.c.b16 %v557, %v556
        %vm562 = vcmask 261120
        %v564 = vsel %vm562, %v534, 0
        %566 = vmatprep.subr.bf16.mxu0 0
        %567 = vmatpush1.bf16.msra.mxu0 %v558
        %568 = vmatprep.subr.bf16.mxu0 0
        %569 = vmatpush1.bf16.msra.mxu0 %v559
        %570 = vmatprep.subr.bf16.mxu0 0
        %571 = vmatpush1.bf16.msra.mxu0 0
        %572 = vmatprep.subr.bf16.mxu0 0
        %573 = vmatpush1.bf16.msra.mxu0 0
        %574 = vmatprep.subr.bf16.mxu0 0
        %575 = vmatpush1.bf16.msra.mxu0 0
        %576 = vmatprep.subr.bf16.mxu0 0
        %577 = vmatpush1.bf16.msra.mxu0 0
        %578 = vmatprep.subr.bf16.mxu0 0
        %579 = vmatpush1.bf16.msra.mxu0 0
        %580 = vmatprep.subr.bf16.mxu0 0
        %581 = vmatpush1.bf16.msra.mxu0 0
        %582 = vmatprep.subr.bf16.mxu0 0
        %583 = vmatpush1.bf16.msra.mxu0 0
        %584 = vmatprep.subr.bf16.mxu0 0
        %585 = vmatpush1.bf16.msra.mxu0 0
        %586 = vmatprep.subr.bf16.mxu0 0
        %587 = vmatpush1.bf16.msra.mxu0 0
        %588 = vmatprep.subr.bf16.mxu0 0
        %589 = vmatpush1.bf16.msra.mxu0 0
        %590 = vmatprep.subr.bf16.mxu0 0
        %591 = vmatpush1.bf16.msra.mxu0 0
        %592 = vmatprep.subr.bf16.mxu0 0
        %593 = vmatpush1.bf16.msra.mxu0 0
        %594 = vmatprep.subr.bf16.mxu0 0
        %595 = vmatpush1.bf16.msra.mxu0 0
        %596 = vmatprep.subr.bf16.mxu0 0
        %597 = vmatpush1.bf16.msra.mxu0 0
        %598 = vmatprep.mubr.bf16.mxu0 0
        %599 = vmatmul.mubr.bf16.gmra.mrb[0].mxu0 %v564
        %v600 = vpop.f32.mrb[0].mxu0
        %v601 = vadd.f32 %v548, %v600
        %v602 = vpop.f32.mrb[0].mxu0
        %v603 = vpop.f32.mrb[0].mxu0
        %v604 = vpop.f32.mrb[0].mxu0
        %605 = vdwg.mxu0
        %v606 = vpack.c.bf16 %v601, %v601
        %v607 = vld [vmem:[%s5] sm:$0xf]
        %v608 = vld [vmem:[%s5 + $0x4] sm:$0xf]
        %v609 = vld [vmem:[%s5 + $0x8] sm:$0xf]
        %v610 = vld [vmem:[%s5 + $0xc] sm:$0xf]
        %v611 = vld [vmem:[%s6] sm:$0x1]
        %v613 = vlaneseq
        %v614 = vshrl.u32 %v613, 7
        %v615 = vsub.s32 0, %v614
        %v616 = vrot.slane %v611, %v615
        %v622 = vunpack.c.l.b16 %v607
        %v623 = vunpack.c.l.b16 %v608
        %v624 = vunpack.c.l.b16 %v609
        %v625 = vunpack.c.l.b16 %v610
        %v626 = vpack.c.b16 %v623, %v622
        %v627 = vpack.c.b16 %v625, %v624
        %v631 = vsel %vm562, %v536, 0
        %633 = vmatprep.subr.bf16.mxu0 0
        %634 = vmatpush1.bf16.msra.mxu0 %v626
        %635 = vmatprep.subr.bf16.mxu0 0
        %636 = vmatpush1.bf16.msra.mxu0 %v627
        %637 = vmatprep.subr.bf16.mxu0 0
        %638 = vmatpush1.bf16.msra.mxu0 0
        %639 = vmatprep.subr.bf16.mxu0 0
        %640 = vmatpush1.bf16.msra.mxu0 0
        %641 = vmatprep.subr.bf16.mxu0 0
        %642 = vmatpush1.bf16.msra.mxu0 0
        %643 = vmatprep.subr.bf16.mxu0 0
        %644 = vmatpush1.bf16.msra.mxu0 0
        %645 = vmatprep.subr.bf16.mxu0 0
        %646 = vmatpush1.bf16.msra.mxu0 0
        %647 = vmatprep.subr.bf16.mxu0 0
        %648 = vmatpush1.bf16.msra.mxu0 0
        %649 = vmatprep.subr.bf16.mxu0 0
        %650 = vmatpush1.bf16.msra.mxu0 0
        %651 = vmatprep.subr.bf16.mxu0 0
        %652 = vmatpush1.bf16.msra.mxu0 0
        %653 = vmatprep.subr.bf16.mxu0 0
        %654 = vmatpush1.bf16.msra.mxu0 0
        %655 = vmatprep.subr.bf16.mxu0 0
        %656 = vmatpush1.bf16.msra.mxu0 0
        %657 = vmatprep.subr.bf16.mxu0 0
        %658 = vmatpush1.bf16.msra.mxu0 0
        %659 = vmatprep.subr.bf16.mxu0 0
        %660 = vmatpush1.bf16.msra.mxu0 0
        %661 = vmatprep.subr.bf16.mxu0 0
        %662 = vmatpush1.bf16.msra.mxu0 0
        %663 = vmatprep.subr.bf16.mxu0 0
        %664 = vmatpush1.bf16.msra.mxu0 0
        %665 = vmatprep.mubr.bf16.mxu0 0
        %666 = vmatmul.mubr.bf16.gmra.mrb[0].mxu0 %v631
        %v667 = vpop.f32.mrb[0].mxu0
        %v668 = vadd.f32 %v616, %v667
        %v669 = vpop.f32.mrb[0].mxu0
        %v670 = vpop.f32.mrb[0].mxu0
        %v671 = vpop.f32.mrb[0].mxu0
        %672 = vdwg.mxu0
        %v673 = vpack.c.bf16 %v668, %v668
        %v674 = vld [vmem:[#allocation10] sm:$0xf]
        %v675 = vld [vmem:[#allocation10 + $0x4] sm:$0xf]
        %v676 = vld [vmem:[#allocation10 + $0x8] sm:$0xf]
        %v677 = vld [vmem:[#allocation10 + $0xc] sm:$0xf]
        %v678 = vld [vmem:[#allocation11] sm:$0x1]
        %v680 = vlaneseq
        %v681 = vshrl.u32 %v680, 7
        %v682 = vsub.s32 0, %v681
        %v683 = vrot.slane %v678, %v682
        %v689 = vunpack.c.l.b16 %v674
        %v690 = vunpack.c.l.b16 %v675
        %v691 = vunpack.c.l.b16 %v676
        %v692 = vunpack.c.l.b16 %v677
        %v693 = vpack.c.b16 %v690, %v689
        %v694 = vpack.c.b16 %v692, %v691
        %v698 = vsel %vm562, %v538, 0
        %700 = vmatprep.subr.bf16.mxu0 0
        %701 = vmatpush1.bf16.msra.mxu0 %v693
        %702 = vmatprep.subr.bf16.mxu0 0
        %703 = vmatpush1.bf16.msra.mxu0 %v694
        %704 = vmatprep.subr.bf16.mxu0 0
        %705 = vmatpush1.bf16.msra.mxu0 0
        %706 = vmatprep.subr.bf16.mxu0 0
        %707 = vmatpush1.bf16.msra.mxu0 0
        %708 = vmatprep.subr.bf16.mxu0 0
        %709 = vmatpush1.bf16.msra.mxu0 0
        %710 = vmatprep.subr.bf16.mxu0 0
        %711 = vmatpush1.bf16.msra.mxu0 0
        %712 = vmatprep.subr.bf16.mxu0 0
        %713 = vmatpush1.bf16.msra.mxu0 0
        %714 = vmatprep.subr.bf16.mxu0 0
        %715 = vmatpush1.bf16.msra.mxu0 0
        %716 = vmatprep.subr.bf16.mxu0 0
        %717 = vmatpush1.bf16.msra.mxu0 0
        %718 = vmatprep.subr.bf16.mxu0 0
        %719 = vmatpush1.bf16.msra.mxu0 0
        %720 = vmatprep.subr.bf16.mxu0 0
        %721 = vmatpush1.bf16.msra.mxu0 0
        %722 = vmatprep.subr.bf16.mxu0 0
        %723 = vmatpush1.bf16.msra.mxu0 0
        %724 = vmatprep.subr.bf16.mxu0 0
        %725 = vmatpush1.bf16.msra.mxu0 0
        %726 = vmatprep.subr.bf16.mxu0 0
        %727 = vmatpush1.bf16.msra.mxu0 0
        %728 = vmatprep.subr.bf16.mxu0 0
        %729 = vmatpush1.bf16.msra.mxu0 0
        %730 = vmatprep.subr.bf16.mxu0 0
        %731 = vmatpush1.bf16.msra.mxu0 0
        %732 = vmatprep.mubr.bf16.mxu0 0
        %733 = vmatmul.mubr.bf16.gmra.mrb[0].mxu0 %v698
        %v734 = vpop.f32.mrb[0].mxu0
        %v735 = vadd.f32 %v683, %v734
        %v736 = vpop.f32.mrb[0].mxu0
        %v737 = vpop.f32.mrb[0].mxu0
        %v738 = vpop.f32.mrb[0].mxu0
        %739 = vdwg.mxu0
        %v740 = vpack.c.bf16 %v735, %v735
        %vm741 = vcmask 64512
        %v743 = vsel %vm741, %v606, 0
        %v746 = vsel %vm741, %v673, 0
        %748 = vmatprep.subr.bf16.mxu0 0
        %749 = vmatpush1.bf16.xpose.msra.mxu0 %v746
        %750 = vmatprep.subr.bf16.mxu0 0
        %751 = vmatpush1.bf16.xpose.msra.mxu0 0
        %752 = vmatprep.subr.bf16.mxu0 0
        %753 = vmatpush1.bf16.xpose.msra.mxu0 0
        %754 = vmatprep.subr.bf16.mxu0 0
        %755 = vmatpush1.bf16.xpose.msra.mxu0 0
        %756 = vmatprep.subr.bf16.mxu0 0
        %757 = vmatpush1.bf16.xpose.msra.mxu0 0
        %758 = vmatprep.subr.bf16.mxu0 0
        %759 = vmatpush1.bf16.xpose.msra.mxu0 0
        %760 = vmatprep.subr.bf16.mxu0 0
        %761 = vmatpush1.bf16.xpose.msra.mxu0 0
        %762 = vmatprep.subr.bf16.mxu0 0
        %763 = vmatpush1.bf16.xpose.msra.mxu0 0
        %764 = vmatprep.subr.bf16.mxu0 0
        %765 = vmatpush1.bf16.xpose.msra.mxu0 0
        %766 = vmatprep.subr.bf16.mxu0 0
        %767 = vmatpush1.bf16.xpose.msra.mxu0 0
        %768 = vmatprep.subr.bf16.mxu0 0
        %769 = vmatpush1.bf16.xpose.msra.mxu0 0
        %770 = vmatprep.subr.bf16.mxu0 0
        %771 = vmatpush1.bf16.xpose.msra.mxu0 0
        %772 = vmatprep.subr.bf16.mxu0 0
        %773 = vmatpush1.bf16.xpose.msra.mxu0 0
        %774 = vmatprep.subr.bf16.mxu0 0
        %775 = vmatpush1.bf16.xpose.msra.mxu0 0
        %776 = vmatprep.subr.bf16.mxu0 0
        %777 = vmatpush1.bf16.xpose.msra.mxu0 0
        %778 = vmatprep.subr.bf16.mxu0 0
        %779 = vmatpush1.bf16.xpose.msra.mxu0 0
        %780 = vmatprep.mubr.bf16.mxu0 0
        %781 = vmatmul.mubr.bf16.gmra.mrb[0].mxu0 %v743
        %v782 = vpop.f32.mrb[0].mxu0
        %v783 = vadd.f32 0.0, %v782
        %v784 = vpop.f32.mrb[0].mxu0
        %v785 = vpop.f32.mrb[0].mxu0
        %v786 = vpop.f32.mrb[0].mxu0
        %787 = vdwg.mxu0
        %v788 = vsel %vm741, %v783, -inf
        %789 = vmax.xlane.f32.xlu0 %v788
        %v790 = vpop.xlane.xlu0 %789
        %v791 = vsub.f32 %v783, %v790
        %v792 = vmul.f32 %v791, 1.442695
        %v793 = vpow.pop %v792
        %v794 = vsel %vm741, %v793, 0.0
        %795 = vadd.xlane.f32.xlu0 %v794
        %v796 = vpop.xlane.xlu0 %795
        %v797 = vrcp.pop %v796
        %v798 = vpack.c.bf16 %v793, %v793
        %v800 = vsel %vm741, %v798, 0
        %vm802 = vcmask 1043456
        %v804 = vsel %vm802, %v740, 0
        %806 = vmatprep.subr.bf16.mxu0 0
        %807 = vmatpush1.bf16.msra.mxu0 %v804
        %808 = vmatprep.subr.bf16.mxu0 0
        %809 = vmatpush1.bf16.msra.mxu0 0
        %810 = vmatprep.subr.bf16.mxu0 0
        %811 = vmatpush1.bf16.msra.mxu0 0
        %812 = vmatprep.subr.bf16.mxu0 0
        %813 = vmatpush1.bf16.msra.mxu0 0
        %814 = vmatprep.subr.bf16.mxu0 0
        %815 = vmatpush1.bf16.msra.mxu0 0
        %816 = vmatprep.subr.bf16.mxu0 0
        %817 = vmatpush1.bf16.msra.mxu0 0
        %818 = vmatprep.subr.bf16.mxu0 0
        %819 = vmatpush1.bf16.msra.mxu0 0
        %820 = vmatprep.subr.bf16.mxu0 0
        %821 = vmatpush1.bf16.msra.mxu0 0
        %822 = vmatprep.subr.bf16.mxu0 0
        %823 = vmatpush1.bf16.msra.mxu0 0
        %824 = vmatprep.subr.bf16.mxu0 0
        %825 = vmatpush1.bf16.msra.mxu0 0
        %826 = vmatprep.subr.bf16.mxu0 0
        %827 = vmatpush1.bf16.msra.mxu0 0
        %828 = vmatprep.subr.bf16.mxu0 0
        %829 = vmatpush1.bf16.msra.mxu0 0
        %830 = vmatprep.subr.bf16.mxu0 0
        %831 = vmatpush1.bf16.msra.mxu0 0
        %832 = vmatprep.subr.bf16.mxu0 0
        %833 = vmatpush1.bf16.msra.mxu0 0
        %834 = vmatprep.subr.bf16.mxu0 0
        %835 = vmatpush1.bf16.msra.mxu0 0
        %836 = vmatprep.subr.bf16.mxu0 0
        %837 = vmatpush1.bf16.msra.mxu0 0
        %838 = vmatprep.mubr.bf16.mxu0 0
        %839 = vmatmul.mubr.bf16.gmra.mrb[0].mxu0 %v800
        %v840 = vpop.f32.mrb[0].mxu0
        %v841 = vadd.f32 0.0, %v840
        %v842 = vpop.f32.mrb[0].mxu0
        %v843 = vpop.f32.mrb[0].mxu0
        %v844 = vpop.f32.mrb[0].mxu0
        %845 = vdwg.mxu0
        %v846 = vmul.f32 %v841, %v797
        %v847 = vpack.c.bf16 %v846, %v846
        %v848 = vld [vmem:[%s9] sm:$0xf]
        %850 = vrot.lane.b32.xlu0 %v606, 120
        %v851 = vpop.permute.xlu0 %850
        %853 = vrot.lane.b32.xlu0 %v673, 120
        %v854 = vpop.permute.xlu0 %853
        %v856 = vsel %vm741, %v851, 0
        %v859 = vsel %vm741, %v854, 0
        %861 = vmatprep.subr.bf16.mxu0 0
        %862 = vmatpush1.bf16.xpose.msra.mxu0 %v859
        %863 = vmatprep.subr.bf16.mxu0 0
        %864 = vmatpush1.bf16.xpose.msra.mxu0 0
        %865 = vmatprep.subr.bf16.mxu0 0
        %866 = vmatpush1.bf16.xpose.msra.mxu0 0
        %867 = vmatprep.subr.bf16.mxu0 0
        %868 = vmatpush1.bf16.xpose.msra.mxu0 0
        %869 = vmatprep.subr.bf16.mxu0 0
        %870 = vmatpush1.bf16.xpose.msra.mxu0 0
        %871 = vmatprep.subr.bf16.mxu0 0
        %872 = vmatpush1.bf16.xpose.msra.mxu0 0
        %873 = vmatprep.subr.bf16.mxu0 0
        %874 = vmatpush1.bf16.xpose.msra.mxu0 0
        %875 = vmatprep.subr.bf16.mxu0 0
        %876 = vmatpush1.bf16.xpose.msra.mxu0 0
        %877 = vmatprep.subr.bf16.mxu0 0
        %878 = vmatpush1.bf16.xpose.msra.mxu0 0
        %879 = vmatprep.subr.bf16.mxu0 0
        %880 = vmatpush1.bf16.xpose.msra.mxu0 0
        %881 = vmatprep.subr.bf16.mxu0 0
        %882 = vmatpush1.bf16.xpose.msra.mxu0 0
        %883 = vmatprep.subr.bf16.mxu0 0
        %884 = vmatpush1.bf16.xpose.msra.mxu0 0
        %885 = vmatprep.subr.bf16.mxu0 0
        %886 = vmatpush1.bf16.xpose.msra.mxu0 0
        %887 = vmatprep.subr.bf16.mxu0 0
        %888 = vmatpush1.bf16.xpose.msra.mxu0 0
        %889 = vmatprep.subr.bf16.mxu0 0
        %890 = vmatpush1.bf16.xpose.msra.mxu0 0
        %891 = vmatprep.subr.bf16.mxu0 0
        %892 = vmatpush1.bf16.xpose.msra.mxu0 0
        %893 = vmatprep.mubr.bf16.mxu0 0
        %894 = vmatmul.mubr.bf16.gmra.mrb[0].mxu0 %v856
        %v895 = vpop.f32.mrb[0].mxu0
        %v896 = vadd.f32 0.0, %v895
        %v897 = vpop.f32.mrb[0].mxu0
        %v898 = vpop.f32.mrb[0].mxu0
        %v899 = vpop.f32.mrb[0].mxu0
        %900 = vdwg.mxu0
        %v901 = vsel %vm741, %v896, -inf
        %902 = vmax.xlane.f32.xlu0 %v901
        %v903 = vpop.xlane.xlu0 %902
        %v904 = vsub.f32 %v896, %v903
        %v905 = vmul.f32 %v904, 1.442695
        %v906 = vpow.pop %v905
        %v907 = vsel %vm741, %v906, 0.0
        %908 = vadd.xlane.f32.xlu0 %v907
        %v909 = vpop.xlane.xlu0 %908
        %v910 = vrcp.pop %v909
        %v911 = vpack.c.bf16 %v906, %v906
        %913 = vrot.lane.b32.xlu0 %v740, 120
        %v914 = vpop.permute.xlu0 %913
        %v916 = vsel %vm741, %v911, 0
        %v919 = vsel %vm802, %v914, 0
        %921 = vmatprep.subr.bf16.mxu0 0
        %922 = vmatpush1.bf16.msra.mxu0 %v919
        %923 = vmatprep.subr.bf16.mxu0 0
        %924 = vmatpush1.bf16.msra.mxu0 0
        %925 = vmatprep.subr.bf16.mxu0 0
        %926 = vmatpush1.bf16.msra.mxu0 0
        %927 = vmatprep.subr.bf16.mxu0 0
        %928 = vmatpush1.bf16.msra.mxu0 0
        %929 = vmatprep.subr.bf16.mxu0 0
        %930 = vmatpush1.bf16.msra.mxu0 0
        %931 = vmatprep.subr.bf16.mxu0 0
        %932 = vmatpush1.bf16.msra.mxu0 0
        %933 = vmatprep.subr.bf16.mxu0 0
        %934 = vmatpush1.bf16.msra.mxu0 0
        %935 = vmatprep.subr.bf16.mxu0 0
        %936 = vmatpush1.bf16.msra.mxu0 0
        %937 = vmatprep.subr.bf16.mxu0 0
        %938 = vmatpush1.bf16.msra.mxu0 0
        %939 = vmatprep.subr.bf16.mxu0 0
        %940 = vmatpush1.bf16.msra.mxu0 0
        %941 = vmatprep.subr.bf16.mxu0 0
        %942 = vmatpush1.bf16.msra.mxu0 0
        %943 = vmatprep.subr.bf16.mxu0 0
        %944 = vmatpush1.bf16.msra.mxu0 0
        %945 = vmatprep.subr.bf16.mxu0 0
        %946 = vmatpush1.bf16.msra.mxu0 0
        %947 = vmatprep.subr.bf16.mxu0 0
        %948 = vmatpush1.bf16.msra.mxu0 0
        %949 = vmatprep.subr.bf16.mxu0 0
        %950 = vmatpush1.bf16.msra.mxu0 0
        %951 = vmatprep.subr.bf16.mxu0 0
        %952 = vmatpush1.bf16.msra.mxu0 0
        %953 = vmatprep.mubr.bf16.mxu0 0
        %954 = vmatmul.mubr.bf16.gmra.mrb[0].mxu0 %v916
        %v955 = vpop.f32.mrb[0].mxu0
        %v956 = vadd.f32 0.0, %v955
        %v957 = vpop.f32.mrb[0].mxu0
        %v958 = vpop.f32.mrb[0].mxu0
        %v959 = vpop.f32.mrb[0].mxu0
        %960 = vdwg.mxu0
        %v961 = vmul.f32 %v956, %v910
        %v962 = vpack.c.bf16 %v961, %v961
        %v963 = vld [vmem:[%s9 + $0x4] sm:$0xf]
        %v965 = vsel %vm741, %v962, 0
        %v968 = vsel %vm802, %v963, 0
        %970 = vmatprep.subr.bf16.mxu0 0
        %971 = vmatpush1.bf16.msra.mxu0 %v968
        %972 = vmatprep.subr.bf16.mxu0 0
        %973 = vmatpush1.bf16.msra.mxu0 0
        %974 = vmatprep.subr.bf16.mxu0 0
        %975 = vmatpush1.bf16.msra.mxu0 0
        %976 = vmatprep.subr.bf16.mxu0 0
        %977 = vmatpush1.bf16.msra.mxu0 0
        %978 = vmatprep.subr.bf16.mxu0 0
        %979 = vmatpush1.bf16.msra.mxu0 0
        %980 = vmatprep.subr.bf16.mxu0 0
        %981 = vmatpush1.bf16.msra.mxu0 0
        %982 = vmatprep.subr.bf16.mxu0 0
        %983 = vmatpush1.bf16.msra.mxu0 0
        %984 = vmatprep.subr.bf16.mxu0 0
        %985 = vmatpush1.bf16.msra.mxu0 0
        %986 = vmatprep.subr.bf16.mxu0 0
        %987 = vmatpush1.bf16.msra.mxu0 0
        %988 = vmatprep.subr.bf16.mxu0 0
        %989 = vmatpush1.bf16.msra.mxu0 0
        %990 = vmatprep.subr.bf16.mxu0 0
        %991 = vmatpush1.bf16.msra.mxu0 0
        %992 = vmatprep.subr.bf16.mxu0 0
        %993 = vmatpush1.bf16.msra.mxu0 0
        %994 = vmatprep.subr.bf16.mxu0 0
        %995 = vmatpush1.bf16.msra.mxu0 0
        %996 = vmatprep.subr.bf16.mxu0 0
        %997 = vmatpush1.bf16.msra.mxu0 0
        %998 = vmatprep.subr.bf16.mxu0 0
        %999 = vmatpush1.bf16.msra.mxu0 0
        %1000 = vmatprep.subr.bf16.mxu0 0
        %1001 = vmatpush1.bf16.msra.mxu0 0
        %1002 = vmatprep.mubr.bf16.mxu0 0
        %1003 = vmatmul.mubr.bf16.gmra.mrb[0].mxu0 %v965
        %v1004 = vpop.f32.mrb[0].mxu0
        %v1005 = vadd.f32 0.0, %v1004
        %v1006 = vpop.f32.mrb[0].mxu0
        %v1007 = vpop.f32.mrb[0].mxu0
        %v1008 = vpop.f32.mrb[0].mxu0
        %1009 = vdwg.mxu0
        %v1011 = vsel %vm741, %v847, 0
        %v1014 = vsel %vm802, %v848, 0
        %1016 = vmatprep.subr.bf16.mxu0 0
        %1017 = vmatpush1.bf16.msra.mxu0 %v1014
        %1018 = vmatprep.subr.bf16.mxu0 0
        %1019 = vmatpush1.bf16.msra.mxu0 0
        %1020 = vmatprep.subr.bf16.mxu0 0
        %1021 = vmatpush1.bf16.msra.mxu0 0
        %1022 = vmatprep.subr.bf16.mxu0 0
        %1023 = vmatpush1.bf16.msra.mxu0 0
        %1024 = vmatprep.subr.bf16.mxu0 0
        %1025 = vmatpush1.bf16.msra.mxu0 0
        %1026 = vmatprep.subr.bf16.mxu0 0
        %1027 = vmatpush1.bf16.msra.mxu0 0
        %1028 = vmatprep.subr.bf16.mxu0 0
        %1029 = vmatpush1.bf16.msra.mxu0 0
        %1030 = vmatprep.subr.bf16.mxu0 0
        %1031 = vmatpush1.bf16.msra.mxu0 0
        %1032 = vmatprep.subr.bf16.mxu0 0
        %1033 = vmatpush1.bf16.msra.mxu0 0
        %1034 = vmatprep.subr.bf16.mxu0 0
        %1035 = vmatpush1.bf16.msra.mxu0 0
        %1036 = vmatprep.subr.bf16.mxu0 0
        %1037 = vmatpush1.bf16.msra.mxu0 0
        %1038 = vmatprep.subr.bf16.mxu0 0
        %1039 = vmatpush1.bf16.msra.mxu0 0
        %1040 = vmatprep.subr.bf16.mxu0 0
        %1041 = vmatpush1.bf16.msra.mxu0 0
        %1042 = vmatprep.subr.bf16.mxu0 0
        %1043 = vmatpush1.bf16.msra.mxu0 0
        %1044 = vmatprep.subr.bf16.mxu0 0
        %1045 = vmatpush1.bf16.msra.mxu0 0
        %1046 = vmatprep.subr.bf16.mxu0 0
        %1047 = vmatpush1.bf16.msra.mxu0 0
        %1048 = vmatprep.mubr.bf16.mxu0 0
        %1049 = vmatmul.mubr.bf16.gmra.mrb[0].mxu0 %v1011
        %v1050 = vpop.f32.mrb[0].mxu0
        %v1051 = vadd.f32 %v1005, %v1050
        %v1052 = vpop.f32.mrb[0].mxu0
        %v1053 = vpop.f32.mrb[0].mxu0
        %v1054 = vpop.f32.mrb[0].mxu0
        %1055 = vdwg.mxu0
        %1056 = vrot.lane.b32.xlu0 %v606, 112
        %v1057 = vpop.permute.xlu0 %1056
        %1058 = vrot.lane.b32.xlu0 %v673, 112
        %v1059 = vpop.permute.xlu0 %1058
        %v1061 = vsel %vm741, %v1057, 0
        %v1064 = vsel %vm741, %v1059, 0
        %1066 = vmatprep.subr.bf16.mxu0 0
        %1067 = vmatpush1.bf16.xpose.msra.mxu0 %v1064
        %1068 = vmatprep.subr.bf16.mxu0 0
        %1069 = vmatpush1.bf16.xpose.msra.mxu0 0
        %1070 = vmatprep.subr.bf16.mxu0 0
        %1071 = vmatpush1.bf16.xpose.msra.mxu0 0
        %1072 = vmatprep.subr.bf16.mxu0 0
        %1073 = vmatpush1.bf16.xpose.msra.mxu0 0
        %1074 = vmatprep.subr.bf16.mxu0 0
        %1075 = vmatpush1.bf16.xpose.msra.mxu0 0
        %1076 = vmatprep.subr.bf16.mxu0 0
        %1077 = vmatpush1.bf16.xpose.msra.mxu0 0
        %1078 = vmatprep.subr.bf16.mxu0 0
        %1079 = vmatpush1.bf16.xpose.msra.mxu0 0
        %1080 = vmatprep.subr.bf16.mxu0 0
        %1081 = vmatpush1.bf16.xpose.msra.mxu0 0
        %1082 = vmatprep.subr.bf16.mxu0 0
        %1083 = vmatpush1.bf16.xpose.msra.mxu0 0
        %1084 = vmatprep.subr.bf16.mxu0 0
        %1085 = vmatpush1.bf16.xpose.msra.mxu0 0
        %1086 = vmatprep.subr.bf16.mxu0 0
        %1087 = vmatpush1.bf16.xpose.msra.mxu0 0
        %1088 = vmatprep.subr.bf16.mxu0 0
        %1089 = vmatpush1.bf16.xpose.msra.mxu0 0
        %1090 = vmatprep.subr.bf16.mxu0 0
        %1091 = vmatpush1.bf16.xpose.msra.mxu0 0
        %1092 = vmatprep.subr.bf16.mxu0 0
        %1093 = vmatpush1.bf16.xpose.msra.mxu0 0
        %1094 = vmatprep.subr.bf16.mxu0 0
        %1095 = vmatpush1.bf16.xpose.msra.mxu0 0
        %1096 = vmatprep.subr.bf16.mxu0 0
        %1097 = vmatpush1.bf16.xpose.msra.mxu0 0
        %1098 = vmatprep.mubr.bf16.mxu0 0
        %1099 = vmatmul.mubr.bf16.gmra.mrb[0].mxu0 %v1061
        %v1100 = vpop.f32.mrb[0].mxu0
        %v1101 = vadd.f32 0.0, %v1100
        %v1102 = vpop.f32.mrb[0].mxu0
        %v1103 = vpop.f32.mrb[0].mxu0
        %v1104 = vpop.f32.mrb[0].mxu0
        %1105 = vdwg.mxu0
        %v1106 = vsel %vm741, %v1101, -inf
        %1107 = vmax.xlane.f32.xlu0 %v1106
        %v1108 = vpop.xlane.xlu0 %1107
        %v1109 = vsub.f32 %v1101, %v1108
        %v1110 = vmul.f32 %v1109, 1.442695
        %v1111 = vpow.pop %v1110
        %v1112 = vsel %vm741, %v1111, 0.0
        %1113 = vadd.xlane.f32.xlu0 %v1112
        %v1114 = vpop.xlane.xlu0 %1113
        %v1115 = vrcp.pop %v1114
        %v1116 = vpack.c.bf16 %v1111, %v1111
        %1117 = vrot.lane.b32.xlu0 %v740, 112
        %v1118 = vpop.permute.xlu0 %1117
        %v1120 = vsel %vm741, %v1116, 0
        %v1123 = vsel %vm802, %v1118, 0
        %1125 = vmatprep.subr.bf16.mxu0 0
        %1126 = vmatpush1.bf16.msra.mxu0 %v1123
        %1127 = vmatprep.subr.bf16.mxu0 0
        %1128 = vmatpush1.bf16.msra.mxu0 0
        %1129 = vmatprep.subr.bf16.mxu0 0
        %1130 = vmatpush1.bf16.msra.mxu0 0
        %1131 = vmatprep.subr.bf16.mxu0 0
        %1132 = vmatpush1.bf16.msra.mxu0 0
        %1133 = vmatprep.subr.bf16.mxu0 0
        %1134 = vmatpush1.bf16.msra.mxu0 0
        %1135 = vmatprep.subr.bf16.mxu0 0
        %1136 = vmatpush1.bf16.msra.mxu0 0
        %1137 = vmatprep.subr.bf16.mxu0 0
        %1138 = vmatpush1.bf16.msra.mxu0 0
        %1139 = vmatprep.subr.bf16.mxu0 0
        %1140 = vmatpush1.bf16.msra.mxu0 0
        %1141 = vmatprep.subr.bf16.mxu0 0
        %1142 = vmatpush1.bf16.msra.mxu0 0
        %1143 = vmatprep.subr.bf16.mxu0 0
        %1144 = vmatpush1.bf16.msra.mxu0 0
        %1145 = vmatprep.subr.bf16.mxu0 0
        %1146 = vmatpush1.bf16.msra.mxu0 0
        %1147 = vmatprep.subr.bf16.mxu0 0
        %1148 = vmatpush1.bf16.msra.mxu0 0
        %1149 = vmatprep.subr.bf16.mxu0 0
        %1150 = vmatpush1.bf16.msra.mxu0 0
        %1151 = vmatprep.subr.bf16.mxu0 0
        %1152 = vmatpush1.bf16.msra.mxu0 0
        %1153 = vmatprep.subr.bf16.mxu0 0
        %1154 = vmatpush1.bf16.msra.mxu0 0
        %1155 = vmatprep.subr.bf16.mxu0 0
        %1156 = vmatpush1.bf16.msra.mxu0 0
        %1157 = vmatprep.mubr.bf16.mxu0 0
        %1158 = vmatmul.mubr.bf16.gmra.mrb[0].mxu0 %v1120
        %v1159 = vpop.f32.mrb[0].mxu0
        %v1160 = vadd.f32 0.0, %v1159
        %v1161 = vpop.f32.mrb[0].mxu0
        %v1162 = vpop.f32.mrb[0].mxu0
        %v1163 = vpop.f32.mrb[0].mxu0
        %1164 = vdwg.mxu0
        %v1165 = vmul.f32 %v1160, %v1115
        %v1166 = vpack.c.bf16 %v1165, %v1165
        %v1167 = vld [vmem:[%s9 + $0x8] sm:$0xf]
        %v1169 = vsel %vm741, %v1166, 0
        %v1172 = vsel %vm802, %v1167, 0
        %1174 = vmatprep.subr.bf16.mxu0 0
        %1175 = vmatpush1.bf16.msra.mxu0 %v1172
        %1176 = vmatprep.subr.bf16.mxu0 0
        %1177 = vmatpush1.bf16.msra.mxu0 0
        %1178 = vmatprep.subr.bf16.mxu0 0
        %1179 = vmatpush1.bf16.msra.mxu0 0
        %1180 = vmatprep.subr.bf16.mxu0 0
        %1181 = vmatpush1.bf16.msra.mxu0 0
        %1182 = vmatprep.subr.bf16.mxu0 0
        %1183 = vmatpush1.bf16.msra.mxu0 0
        %1184 = vmatprep.subr.bf16.mxu0 0
        %1185 = vmatpush1.bf16.msra.mxu0 0
        %1186 = vmatprep.subr.bf16.mxu0 0
        %1187 = vmatpush1.bf16.msra.mxu0 0
        %1188 = vmatprep.subr.bf16.mxu0 0
        %1189 = vmatpush1.bf16.msra.mxu0 0
        %1190 = vmatprep.subr.bf16.mxu0 0
        %1191 = vmatpush1.bf16.msra.mxu0 0
        %1192 = vmatprep.subr.bf16.mxu0 0
        %1193 = vmatpush1.bf16.msra.mxu0 0
        %1194 = vmatprep.subr.bf16.mxu0 0
        %1195 = vmatpush1.bf16.msra.mxu0 0
        %1196 = vmatprep.subr.bf16.mxu0 0
        %1197 = vmatpush1.bf16.msra.mxu0 0
        %1198 = vmatprep.subr.bf16.mxu0 0
        %1199 = vmatpush1.bf16.msra.mxu0 0
        %1200 = vmatprep.subr.bf16.mxu0 0
        %1201 = vmatpush1.bf16.msra.mxu0 0
        %1202 = vmatprep.subr.bf16.mxu0 0
        %1203 = vmatpush1.bf16.msra.mxu0 0
        %1204 = vmatprep.subr.bf16.mxu0 0
        %1205 = vmatpush1.bf16.msra.mxu0 0
        %1206 = vmatprep.mubr.bf16.mxu0 0
        %1207 = vmatmul.mubr.bf16.gmra.mrb[0].mxu0 %v1169
        %v1208 = vpop.f32.mrb[0].mxu0
        %v1209 = vadd.f32 0.0, %v1208
        %v1210 = vpop.f32.mrb[0].mxu0
        %v1211 = vpop.f32.mrb[0].mxu0
        %v1212 = vpop.f32.mrb[0].mxu0
        %1213 = vdwg.mxu0
        %v1214 = vadd.f32 %v1051, %v1209
        %1215 = vrot.lane.b32.xlu0 %v606, 104
        %v1216 = vpop.permute.xlu0 %1215
        %1217 = vrot.lane.b32.xlu0 %v673, 104
        %v1218 = vpop.permute.xlu0 %1217
        %v1220 = vsel %vm741, %v1216, 0
        %v1223 = vsel %vm741, %v1218, 0
        %1225 = vmatprep.subr.bf16.mxu0 0
        %1226 = vmatpush1.bf16.xpose.msra.mxu0 %v1223
        %1227 = vmatprep.subr.bf16.mxu0 0
        %1228 = vmatpush1.bf16.xpose.msra.mxu0 0
        %1229 = vmatprep.subr.bf16.mxu0 0
        %1230 = vmatpush1.bf16.xpose.msra.mxu0 0
        %1231 = vmatprep.subr.bf16.mxu0 0
        %1232 = vmatpush1.bf16.xpose.msra.mxu0 0
        %1233 = vmatprep.subr.bf16.mxu0 0
        %1234 = vmatpush1.bf16.xpose.msra.mxu0 0
        %1235 = vmatprep.subr.bf16.mxu0 0
        %1236 = vmatpush1.bf16.xpose.msra.mxu0 0
        %1237 = vmatprep.subr.bf16.mxu0 0
        %1238 = vmatpush1.bf16.xpose.msra.mxu0 0
        %1239 = vmatprep.subr.bf16.mxu0 0
        %1240 = vmatpush1.bf16.xpose.msra.mxu0 0
        %1241 = vmatprep.subr.bf16.mxu0 0
        %1242 = vmatpush1.bf16.xpose.msra.mxu0 0
        %1243 = vmatprep.subr.bf16.mxu0 0
        %1244 = vmatpush1.bf16.xpose.msra.mxu0 0
        %1245 = vmatprep.subr.bf16.mxu0 0
        %1246 = vmatpush1.bf16.xpose.msra.mxu0 0
        %1247 = vmatprep.subr.bf16.mxu0 0
        %1248 = vmatpush1.bf16.xpose.msra.mxu0 0
        %1249 = vmatprep.subr.bf16.mxu0 0
        %1250 = vmatpush1.bf16.xpose.msra.mxu0 0
        %1251 = vmatprep.subr.bf16.mxu0 0
        %1252 = vmatpush1.bf16.xpose.msra.mxu0 0
        %1253 = vmatprep.subr.bf16.mxu0 0
        %1254 = vmatpush1.bf16.xpose.msra.mxu0 0
        %1255 = vmatprep.subr.bf16.mxu0 0
        %1256 = vmatpush1.bf16.xpose.msra.mxu0 0
        %1257 = vmatprep.mubr.bf16.mxu0 0
        %1258 = vmatmul.mubr.bf16.gmra.mrb[0].mxu0 %v1220
        %v1259 = vpop.f32.mrb[0].mxu0
        %v1260 = vadd.f32 0.0, %v1259
        %v1261 = vpop.f32.mrb[0].mxu0
        %v1262 = vpop.f32.mrb[0].mxu0
        %v1263 = vpop.f32.mrb[0].mxu0
        %1264 = vdwg.mxu0
        %v1265 = vsel %vm741, %v1260, -inf
        %1266 = vmax.xlane.f32.xlu0 %v1265
        %v1267 = vpop.xlane.xlu0 %1266
        %v1268 = vsub.f32 %v1260, %v1267
        %v1269 = vmul.f32 %v1268, 1.442695
        %v1270 = vpow.pop %v1269
        %v1271 = vsel %vm741, %v1270, 0.0
        %1272 = vadd.xlane.f32.xlu0 %v1271
        %v1273 = vpop.xlane.xlu0 %1272
        %v1274 = vrcp.pop %v1273
        %v1275 = vpack.c.bf16 %v1270, %v1270
        %1276 = vrot.lane.b32.xlu0 %v740, 104
        %v1277 = vpop.permute.xlu0 %1276
        %v1279 = vsel %vm741, %v1275, 0
        %v1282 = vsel %vm802, %v1277, 0
        %1284 = vmatprep.subr.bf16.mxu0 0
        %1285 = vmatpush1.bf16.msra.mxu0 %v1282
        %1286 = vmatprep.subr.bf16.mxu0 0
        %1287 = vmatpush1.bf16.msra.mxu0 0
        %1288 = vmatprep.subr.bf16.mxu0 0
        %1289 = vmatpush1.bf16.msra.mxu0 0
        %1290 = vmatprep.subr.bf16.mxu0 0
        %1291 = vmatpush1.bf16.msra.mxu0 0
        %1292 = vmatprep.subr.bf16.mxu0 0
        %1293 = vmatpush1.bf16.msra.mxu0 0
        %1294 = vmatprep.subr.bf16.mxu0 0
        %1295 = vmatpush1.bf16.msra.mxu0 0
        %1296 = vmatprep.subr.bf16.mxu0 0
        %1297 = vmatpush1.bf16.msra.mxu0 0
        %1298 = vmatprep.subr.bf16.mxu0 0
        %1299 = vmatpush1.bf16.msra.mxu0 0
        %1300 = vmatprep.subr.bf16.mxu0 0
        %1301 = vmatpush1.bf16.msra.mxu0 0
        %1302 = vmatprep.subr.bf16.mxu0 0
        %1303 = vmatpush1.bf16.msra.mxu0 0
        %1304 = vmatprep.subr.bf16.mxu0 0
        %1305 = vmatpush1.bf16.msra.mxu0 0
        %1306 = vmatprep.subr.bf16.mxu0 0
        %1307 = vmatpush1.bf16.msra.mxu0 0
        %1308 = vmatprep.subr.bf16.mxu0 0
        %1309 = vmatpush1.bf16.msra.mxu0 0
        %1310 = vmatprep.subr.bf16.mxu0 0
        %1311 = vmatpush1.bf16.msra.mxu0 0
        %1312 = vmatprep.subr.bf16.mxu0 0
        %1313 = vmatpush1.bf16.msra.mxu0 0
        %1314 = vmatprep.subr.bf16.mxu0 0
        %1315 = vmatpush1.bf16.msra.mxu0 0
        %1316 = vmatprep.mubr.bf16.mxu0 0
        %1317 = vmatmul.mubr.bf16.gmra.mrb[0].mxu0 %v1279
        %v1318 = vpop.f32.mrb[0].mxu0
        %v1319 = vadd.f32 0.0, %v1318
        %v1320 = vpop.f32.mrb[0].mxu0
        %v1321 = vpop.f32.mrb[0].mxu0
        %v1322 = vpop.f32.mrb[0].mxu0
        %1323 = vdwg.mxu0
        %v1324 = vmul.f32 %v1319, %v1274
        %v1325 = vpack.c.bf16 %v1324, %v1324
        %v1326 = vld [vmem:[%s9 + $0xc] sm:$0xf]
        %v1328 = vsel %vm741, %v1325, 0
        %v1331 = vsel %vm802, %v1326, 0
        %1333 = vmatprep.subr.bf16.mxu0 0
        %1334 = vmatpush1.bf16.msra.mxu0 %v1331
        %1335 = vmatprep.subr.bf16.mxu0 0
        %1336 = vmatpush1.bf16.msra.mxu0 0
        %1337 = vmatprep.subr.bf16.mxu0 0
        %1338 = vmatpush1.bf16.msra.mxu0 0
        %1339 = vmatprep.subr.bf16.mxu0 0
        %1340 = vmatpush1.bf16.msra.mxu0 0
        %1341 = vmatprep.subr.bf16.mxu0 0
        %1342 = vmatpush1.bf16.msra.mxu0 0
        %1343 = vmatprep.subr.bf16.mxu0 0
        %1344 = vmatpush1.bf16.msra.mxu0 0
        %1345 = vmatprep.subr.bf16.mxu0 0
        %1346 = vmatpush1.bf16.msra.mxu0 0
        %1347 = vmatprep.subr.bf16.mxu0 0
        %1348 = vmatpush1.bf16.msra.mxu0 0
        %1349 = vmatprep.subr.bf16.mxu0 0
        %1350 = vmatpush1.bf16.msra.mxu0 0
        %1351 = vmatprep.subr.bf16.mxu0 0
        %1352 = vmatpush1.bf16.msra.mxu0 0
        %1353 = vmatprep.subr.bf16.mxu0 0
        %1354 = vmatpush1.bf16.msra.mxu0 0
        %1355 = vmatprep.subr.bf16.mxu0 0
        %1356 = vmatpush1.bf16.msra.mxu0 0
        %1357 = vmatprep.subr.bf16.mxu0 0
        %1358 = vmatpush1.bf16.msra.mxu0 0
        %1359 = vmatprep.subr.bf16.mxu0 0
        %1360 = vmatpush1.bf16.msra.mxu0 0
        %1361 = vmatprep.subr.bf16.mxu0 0
        %1362 = vmatpush1.bf16.msra.mxu0 0
        %1363 = vmatprep.subr.bf16.mxu0 0
        %1364 = vmatpush1.bf16.msra.mxu0 0
        %1365 = vmatprep.mubr.bf16.mxu0 0
        %1366 = vmatmul.mubr.bf16.gmra.mrb[0].mxu0 %v1328
        %v1367 = vpop.f32.mrb[0].mxu0
        %v1368 = vadd.f32 0.0, %v1367
        %v1369 = vpop.f32.mrb[0].mxu0
        %v1370 = vpop.f32.mrb[0].mxu0
        %v1371 = vpop.f32.mrb[0].mxu0
        %1372 = vdwg.mxu0
        %v1373 = vadd.f32 %v1214, %v1368
        %v1374 = vld [vmem:[%s10] sm:$0x1]
        %v1376 = vlaneseq
        %v1377 = vshrl.u32 %v1376, 7
        %v1378 = vsub.s32 0, %v1377
        %v1379 = vrot.slane %v1374, %v1378
        %v1381 = vadd.f32 %v1373, %v1379
        %1382 = vst.msk [vmem:[%s531] sm:$0xff] %vm562, %v1381
        %s1383 = sand.u32 %s303, 1
        %s1384 = scalar_lea.sflag [#allocation4], %s1383
        %s1385 = sand.u32 %s303, 1
        %s1386 = smul.addr %s1385, 8
        %s1387 = scalar_lea.vmem [#allocation13], %s1386
        // Predicated region
        $region89: #{tpu_custom_call.1} parent=63 // pred_check
          %p1388 = pneg %p313
        $region90: #{tpu_custom_call.1} parent=63 // pred_check_branch
          %1390 = sbr.rel (%p1388) target = $region92
        $region91: #{tpu_custom_call.1} parent=63 // pred_region
          %s1392 = ssub.s32 128, 128
          %1393 = vsyncadd %s1384, %s1392
          %s1394 = sadd.s32 %s38, %s37
          %s1395 = smul.addr %s1394, 128
          %s1396 = scalar_lea.hbm %s11, %s1395
          %s1398 = sshll.u32 %s1387, 4
          %s1399 = int_to_ptr.vmem [resolvable:$true] %s1398
          %1401 = dma.vmem_to_hbm [thread:$0]  %s1399, 128, %s1396, %s1384
        $region92: #{tpu_custom_call.1} parent=63 // pred_fallthru
          _
      $region64: #{tpu_custom_call.1} parent=5 // pred_fallthru
        _
      %p1402 = scmp.le.s32.totalorder 2, %s28
      // Predicated region
      $region93: #{tpu_custom_call.1} parent=5 // pred_check
        %p1403 = pneg %p1402
      $region94: #{tpu_custom_call.1} parent=5 // pred_check_branch
        %1405 = sbr.rel (%p1403) target = $region96
      $region95: #{tpu_custom_call.1} parent=5 // pred_region
        %s1406 = ssub.s32 %s28, 2
        // Predicated region
        $region97: #{tpu_custom_call.1} parent=95 // pred_check
          %p1407 = pneg %p319
        $region98: #{tpu_custom_call.1} parent=95 // pred_check_branch
          %1409 = sbr.rel (%p1407) target = $region100
        $region99: #{tpu_custom_call.1} parent=95 // pred_region
          %s1410 = sand.u32 %s304, 1
          %s1411 = scalar_lea.sflag [#allocation4], %s1410
          %s1412 = sand.u32 %s304, 1
          %s1413 = smul.addr %s1412, 8
          %s1414 = scalar_lea.vmem [#allocation13], %s1413
          %1415 = dma.done %s1411, 128
        $region100: #{tpu_custom_call.1} parent=95 // pred_fallthru
          _
      $region96: #{tpu_custom_call.1} parent=5 // pred_fallthru
        _
    $region6: #{tpu_custom_call.1} parent=1 // loop_footer
      %s32 = sadd.s32 1, %s28
    $region7: #{tpu_custom_call.1} parent=1 // loop_footer_branch
      %27 = sbr.rel target = $region3
    $region8: #{tpu_custom_call.1} parent=1 // loop_exit
      _
    %1416 = vsyncpa [#allocation3], 1
    %s1417 = scalar_lea.sflag [#allocation3], 1
    %1418 = vsyncpa %s1417, 1
    %1419 = vsyncpa [#allocation6], 1
    %s1420 = scalar_lea.sflag [#allocation6], 1
    %1421 = vsyncpa %s1420, 1
    %1422 = vsyncpa [#allocation9], 1
    %1423 = vsyncpa [#allocation12], 1
    %1424 = vsyncpa [#allocation4], 1
    %s1425 = scalar_lea.sflag [#allocation4], 1
    %1426 = vsyncpa %s1425, 1

</llo_original>
